<compile_context>
chip_gen: v7x
topology: tpu7x:2x2x1
jax: 0.10.0
libtpu: 0.0.40
codegen_flags: <defaults>
</compile_context>

<pallas_src>
from functools import partial

import jax
import jax.numpy as jnp
from jax import lax
from jax.experimental import pallas as pl
from jax.experimental.pallas import tpu as pltpu


def _round_up(x, m):
    return (x + m - 1) // m * m


def _mmd_tile_kernel(a_ref, c_ref, out_ref, *, kernel_mul, kernel_num,
                     nbt, tm, integer_mul):
    """One (tm, tm) tile of the 2B x 2B Gaussian-kernel matrix (upper triangle only).

    a_ref:   (tm, daug_p)  pre-scaled augmented rows   -> A[i] . C[:, j] = -L2[i,j]/bw_max
    c_ref:   (daug_p, tm)  augmented cols (pre-transposed in the wrapper)
    out_ref: (1, 8, 128)   per-row-tile partial-sum slab (accumulated over col tiles)
    """
    i = pl.program_id(0)
    j = pl.program_id(1)

    @pl.when(j == 0)
    def _init():
        out_ref[...] = jnp.zeros_like(out_ref)

    @pl.when(j >= i)  # symmetry: only the upper-triangular tiles do work
    def _compute():
        # Scaled negative squared distance on the MXU:  s = -L2 / bw_max  (<= 0).
        s = lax.dot_general(
            a_ref[...], c_ref[...],
            dimension_numbers=(((1,), (0,)), ((), ())),
            preferred_element_type=jnp.float32,
        )
        s = jnp.minimum(s, 0.0)  # guard against f32 cancellation making L2 < 0

        if integer_mul:
            # exp(-L2/bw_p) = z^(mul^p) with z = exp(-L2/bw_max): a single EUP exp,
            # everything else is 4-wide VALU multiplication.
            m = int(kernel_mul)
            z = jnp.exp(s)
            kern = z
            w = z
            for _ in range(kernel_num - 1):
                nxt = w
                for _ in range(m - 1):
                    nxt = nxt * w          # w^m
                w = nxt
                kern = kern + w
        else:
            # Non-integer kernel_mul: kernel_num independent exps (EUP-bound, ~K x
            # slower than the integer fast path).
            # TODO(synk): exp2-based formulation to cut EUP work for non-integer mul.
            kern = jnp.exp(s * (kernel_mul ** (kernel_num - 1)))
            for p in range(1, kernel_num):
                kern = kern + jnp.exp(s * (kernel_mul ** (kernel_num - 1 - p)))

        # Quadrant sign is a scalar per tile (tiles are aligned to the batch blocks):
        # +1 for XX / YY, -1 for XY / YX.  Off-diagonal tiles counted twice (symmetry).
        same = (i < nbt) == (j < nbt)
        sign = jnp.where(same, 1.0, -1.0)
        symw = jnp.where(i == j, 1.0, 2.0)
        mult = sign * symw

        # vreg-shaped partial reduce (pure VALU, co-issues with MXU/EUP work).
        psum = kern.reshape(tm // 8, 8, tm // 128, 128).sum(axis=(0, 2))
        out_ref[...] += (mult * psum)[None]


def mmd_loss(source, target, kernel_mul=2.0, kernel_num=5, tile=256):
    """Gaussian-kernel MMD loss, matching the PyTorch MMD_loss.forward semantics."""
    assert source.ndim == 2 and source.shape == target.shape
    b, d = source.shape
    n = 2 * b
    src = source.astype(jnp.float32)
    tgt = target.astype(jnp.float32)

    # ---- center features (L2-shift-invariant; improves Gram-trick conditioning) ----
    mean = (jnp.sum(src, axis=0) + jnp.sum(tgt, axis=0)) / float(n)
    src = src - mean
    tgt = tgt - mean

    # ---- analytic bandwidth (O(n*D)): sum(L2) = 2*n*sum|t_i|^2 - 2*|sum_i t_i|^2 ----
    s_sq = jnp.sum(src * src) + jnp.sum(tgt * tgt)
    col_sum = jnp.sum(src, axis=0) + jnp.sum(tgt, axis=0)
    sum_l2 = 2.0 * n * s_sq - 2.0 * jnp.sum(col_sum * col_sum)
    bandwidth = sum_l2 / float(n * n - n)
    bandwidth = bandwidth / (kernel_mul ** (kernel_num // 2))
    bw_max = bandwidth * (kernel_mul ** (kernel_num - 1))
    # NOTE: identical-source/target inputs give bandwidth == 0 -> NaN, exactly as in
    # the PyTorch reference (semantics kept faithful; no epsilon clamp).
    neg_inv_bw_max = -1.0 / bw_max
    # Padded rows get this huge augmented |t|^2 so their kernel entries are
    # exp(<= -1e6) == 0 exactly; no in-kernel masking pass is needed.
    pad_val = 1e6 * bw_max

    # ---- tiling: square tiles (needed for tile-level symmetry), multiples of 128 ----
    tm = max(128, min(int(tile), _round_up(b, 128)))
    tm = _round_up(tm, 128)
    bp = _round_up(b, tm)
    nbt = bp // tm                 # row/col tiles per (source|target) block
    r_tiles = 2 * nbt              # total row tiles
    pad = bp - b
    if pad:
        src = jnp.pad(src, ((0, pad), (0, 0)))
        tgt = jnp.pad(tgt, ((0, pad), (0, 0)))
    total = jnp.concatenate([src, tgt], axis=0)                      # (2*bp, D)

    # ---- augmented operands: A[i] . C[:, j] = -L2[i,j] / bw_max (all f32) ----
    sq = jnp.sum(total * total, axis=1, keepdims=True)               # (2*bp, 1)
    ones = jnp.ones_like(sq)
    if pad:
        row_idx = jnp.arange(2 * bp)
        valid = (row_idx < b) | ((row_idx >= bp) & (row_idx < bp + b))
        sq = jnp.where(valid[:, None], sq, pad_val)
    a_mat = jnp.concatenate([-2.0 * total, sq, ones], axis=1) * neg_inv_bw_max
    c_mat = jnp.concatenate([total, ones, sq], axis=1)
    daug = d + 2
    daug_p = _round_up(daug, 128)   # lane-pad the contraction dim with zero columns
    if daug_p > daug:
        zpad = jnp.zeros((2 * bp, daug_p - daug), jnp.float32)
        a_mat = jnp.concatenate([a_mat, zpad], axis=1)
        c_mat = jnp.concatenate([c_mat, zpad], axis=1)
    c_mat_t = c_mat.T               # (daug_p, 2*bp): K-on-sublane, N-on-lane for the MXU

    integer_mul = float(kernel_mul).is_integer() and kernel_mul >= 1.0

    kernel = partial(
        _mmd_tile_kernel,
        kernel_mul=float(kernel_mul),
        kernel_num=int(kernel_num),
        nbt=int(nbt),
        tm=int(tm),
        integer_mul=integer_mul,
    )

    n_comp = r_tiles * (r_tiles + 1) // 2          # tiles actually computed (symmetry)
    elems = n_comp * tm * tm
    n_trans = 1 if integer_mul else int(kernel_num)
    cost = pl.CostEstimate(
        flops=int(2 * elems * daug_p + 12 * elems),
        transcendentals=int(n_trans * elems),
        bytes_accessed=int(r_tiles * r_tiles * 2 * tm * daug_p * 4
                           + r_tiles * 8 * 128 * 4),
    )

    partials = pl.pallas_call(
        kernel,
        out_shape=jax.ShapeDtypeStruct((r_tiles, 8, 128), jnp.float32),
        grid_spec=pltpu.PrefetchScalarGridSpec(
            num_scalar_prefetch=0,
            grid=(r_tiles, r_tiles),
            in_specs=[
                pl.BlockSpec((tm, daug_p), lambda i, j: (i, 0)),   # row tile of A
                pl.BlockSpec((daug_p, tm), lambda i, j: (0, j)),   # col tile of C^T
            ],
            out_specs=pl.BlockSpec((1, 8, 128), lambda i, j: (i, 0, 0)),
        ),
        compiler_params=pltpu.CompilerParams(
            dimension_semantics=("parallel", "arbitrary"),
        ),
        cost_estimate=cost,
    )(a_mat, c_mat_t)

    # Per-row-tile (8,128) partial slabs -> scalar loss = sum(sign * K) / B^2.
    return jnp.sum(partials) / float(b * b)


def mmd_loss_ref(source, target, kernel_mul=2.0, kernel_num=5):
    """Pure-JAX diff-based reference mirroring the PyTorch module."""
    b = source.shape[0]
    total = jnp.concatenate([source, target], axis=0).astype(jnp.float32)
    n = total.shape[0]
    diff = total[None, :, :] - total[:, None, :]
    l2 = jnp.sum(diff * diff, axis=2)
    bandwidth = jnp.sum(l2) / (n * n - n)
    bandwidth = bandwidth / (kernel_mul ** (kernel_num // 2))
    kernels = sum(jnp.exp(-l2 / (bandwidth * kernel_mul ** i)) for i in range(kernel_num))
    xx = kernels[:b, :b]
    yy = kernels[b:, b:]
    xy = kernels[:b, b:]
    yx = kernels[b:, :b]
    return jnp.mean(xx + yy - xy - yx)


if __name__ == "__main__":
    key = jax.random.PRNGKey(0)
    k1, k2, k3, k4 = jax.random.split(key, 4)

    # Case 1: default kernel_mul=2 (single-exp + squaring fast path), padded tiles.
    b1, d1 = 4, 32
    s1 = jax.random.normal(k1, (b1, d1), dtype=jnp.float32)
    t1 = jax.random.normal(k2, (b1, d1), dtype=jnp.float32) + 0.5
    out1 = jax.block_until_ready(mmd_loss(s1, t1))
    ref1 = jax.block_until_ready(mmd_loss_ref(s1, t1))
    assert jnp.isfinite(out1), "non-finite loss (case 1)"
    assert jnp.allclose(out1, ref1, rtol=1e-3, atol=1e-5), (out1, ref1)

    # Case 2: non-integer kernel_mul (general multi-exp path).
    b2, d2 = 8, 32
    s2 = jax.random.normal(k3, (b2, d2), dtype=jnp.float32)
    t2 = jax.random.normal(k4, (b2, d2), dtype=jnp.float32) * 1.3 + 0.25
    out2 = jax.block_until_ready(mmd_loss(s2, t2, kernel_mul=1.5, kernel_num=5))
    ref2 = jax.block_until_ready(mmd_loss_ref(s2, t2, kernel_mul=1.5, kernel_num=5))
    assert jnp.isfinite(out2), "non-finite loss (case 2)"
    assert jnp.allclose(out2, ref2, rtol=1e-3, atol=1e-5), (out2, ref2)

    # Case 3: integer kernel_mul != 2 exercises the generalized z-powering path.
    out3 = jax.block_until_ready(mmd_loss(s2, t2, kernel_mul=3.0, kernel_num=3))
    ref3 = jax.block_until_ready(mmd_loss_ref(s2, t2, kernel_mul=3.0, kernel_num=3))
    assert jnp.isfinite(out3), "non-finite loss (case 3)"
    assert jnp.allclose(out3, ref3, rtol=1e-3, atol=1e-5), (out3, ref3)

    print("KERNEL_OK")
</pallas_src>

<mosaic_0001>
module attributes {stable_mosaic.version = 11 : i64} {
  func.func @_mmd_tile_kernel(%arg0: i32, %arg1: i32, %arg2: memref<128x128xf32, #tpu.memory_space<vmem>>, %arg3: memref<128x128xf32, #tpu.memory_space<vmem>>, %arg4: memref<1x8x128xf32, #tpu.memory_space<vmem>>) attributes {dimension_semantics = [#tpu.dimension_semantics<parallel>, #tpu.dimension_semantics<arbitrary>], iteration_bounds = array<i64: 2, 2>, scalar_prefetch = 0 : i64, scratch_operands = 0 : i64, tpu.core_type = #tpu.core_type<tc>, window_params = [{transform_indices = @transform_0, window_bounds = array<i64: 128, 128>}, {transform_indices = @transform_1, window_bounds = array<i64: 128, 128>}, {transform_indices = @transform_2, window_bounds = array<i64: 1, 8, 128>}]} {
    %c0_i32 = arith.constant 0 : i32
    %0 = arith.cmpi eq, %arg1, %c0_i32 : i32
    %1 = arith.extui %0 : i1 to i32
    %c0_i32_0 = arith.constant 0 : i32
    %2 = arith.cmpi ne, %1, %c0_i32_0 : i32
    scf.if %2 {
      %cst = arith.constant 0.000000e+00 : f32
      %6 = vector.broadcast %cst : f32 to vector<1x8x128xf32>
      %c0 = arith.constant 0 : index
      %c0_2 = arith.constant 0 : index
      %c0_3 = arith.constant 0 : index
      %7 = vector.load %arg4[%c0, %c0_2, %c0_3] : memref<1x8x128xf32, #tpu.memory_space<vmem>>, vector<1x8x128xf32>
      tpu.vector_store %arg4[%c0, %c0_2, %c0_3], %6 {strides = array<i32>} : memref<1x8x128xf32, #tpu.memory_space<vmem>>, vector<1x8x128xf32>,
    } else {
    }
    %3 = arith.cmpi sge, %arg1, %arg0 : i32
    %4 = arith.extui %3 : i1 to i32
    %c0_i32_1 = arith.constant 0 : i32
    %5 = arith.cmpi ne, %4, %c0_i32_1 : i32
    scf.if %5 {
      %c0 = arith.constant 0 : index
      %c0_2 = arith.constant 0 : index
      %6 = vector.load %arg2[%c0, %c0_2] : memref<128x128xf32, #tpu.memory_space<vmem>>, vector<128x128xf32>
      %c0_3 = arith.constant 0 : index
      %c0_4 = arith.constant 0 : index
      %7 = vector.load %arg3[%c0_3, %c0_4] : memref<128x128xf32, #tpu.memory_space<vmem>>, vector<128x128xf32>
      %cst = arith.constant dense<0.000000e+00> : vector<128x128xf32>
      %8 = tpu.matmul %6, %7, %cst {dimension_numbers = #tpu.dot_dimension_numbers<[1], [0], [0], [1], [0, 0, 1, 1], [], []>} : vector<128x128xf32>, vector<128x128xf32>, vector<128x128xf32> -> vector<128x128xf32>
      %cst_5 = arith.constant 0.000000e+00 : f32
      %9 = vector.broadcast %cst_5 : f32 to vector<128x128xf32>
      %10 = arith.minimumf %8, %9 : vector<128x128xf32>
      %11 = math.exp %10 : vector<128x128xf32>
      %12 = arith.mulf %11, %11 : vector<128x128xf32>
      %13 = arith.addf %11, %12 : vector<128x128xf32>
      %14 = arith.mulf %12, %12 : vector<128x128xf32>
      %15 = arith.addf %13, %14 : vector<128x128xf32>
      %16 = arith.mulf %14, %14 : vector<128x128xf32>
      %17 = arith.addf %15, %16 : vector<128x128xf32>
      %18 = arith.mulf %16, %16 : vector<128x128xf32>
      %19 = arith.addf %17, %18 : vector<128x128xf32>
      %c1_i32 = arith.constant 1 : i32
      %20 = arith.cmpi slt, %arg0, %c1_i32 : i32
      %c1_i32_6 = arith.constant 1 : i32
      %21 = arith.cmpi slt, %arg1, %c1_i32_6 : i32
      %22 = arith.xori %20, %21 : i1
      %true = arith.constant true
      %23 = arith.xori %22, %true : i1
      %cst_7 = arith.constant 1.000000e+00 : f32
      %cst_8 = arith.constant -1.000000e+00 : f32
      %24 = arith.select %23, %cst_7, %cst_8 : f32
      %25 = arith.cmpi eq, %arg0, %arg1 : i32
      %cst_9 = arith.constant 1.000000e+00 : f32
      %cst_10 = arith.constant 2.000000e+00 : f32
      %26 = arith.select %25, %cst_9, %cst_10 : f32
      %27 = arith.mulf %24, %26 : f32
      %28 = vector.shape_cast %19 : vector<128x128xf32> to vector<16x8x1x128xf32>
      %cst_11 = arith.constant dense<0.000000e+00> : vector<8x128xf32>
      %29 = vector.multi_reduction <add>, %28, %cst_11 [0, 2] : vector<16x8x1x128xf32> to vector<8x128xf32>
      %c0_12 = arith.constant 0 : index
      %c0_13 = arith.constant 0 : index
      %c0_14 = arith.constant 0 : index
      %30 = vector.load %arg4[%c0_12, %c0_13, %c0_14] : memref<1x8x128xf32, #tpu.memory_space<vmem>>, vector<1x8x128xf32>
      %31 = vector.broadcast %27 : f32 to vector<8x128xf32>
      %32 = arith.mulf %31, %29 : vector<8x128xf32>
      %33 = vector.shape_cast %32 : vector<8x128xf32> to vector<1x8x128xf32>
      %34 = arith.addf %30, %33 : vector<1x8x128xf32>
      %c0_15 = arith.constant 0 : index
      %c0_16 = arith.constant 0 : index
      %c0_17 = arith.constant 0 : index
      %35 = vector.load %arg4[%c0_15, %c0_16, %c0_17] : memref<1x8x128xf32, #tpu.memory_space<vmem>>, vector<1x8x128xf32>
      tpu.vector_store %arg4[%c0_15, %c0_16, %c0_17], %34 {strides = array<i32>} : memref<1x8x128xf32, #tpu.memory_space<vmem>>, vector<1x8x128xf32>,
    } else {
    }
    return
  }
  func.func @transform_0(%arg0: i32, %arg1: i32) -> (i32, i32) {
    %c0_i32 = arith.constant 0 : i32
    %c0_i32_0 = arith.constant 0 : i32
    return %arg0, %c0_i32 : i32, i32
  }
  func.func @transform_1(%arg0: i32, %arg1: i32) -> (i32, i32) {
    %c0_i32 = arith.constant 0 : i32
    %c0_i32_0 = arith.constant 0 : i32
    return %c0_i32, %arg1 : i32, i32
  }
  func.func @transform_2(%arg0: i32, %arg1: i32) -> (i32, i32, i32) {
    %c0_i32 = arith.constant 0 : i32
    %c0_i32_0 = arith.constant 0 : i32
    %c0_i32_1 = arith.constant 0 : i32
    return %arg0, %c0_i32, %c0_i32_0 : i32, i32, i32
  }
}

</mosaic_0001>

<llo_original>
// kernel: tpu_custom_call.1
$region0: #{tpu_custom_call.1}
  #allocation0 [shape = 'u32[]', space=smem, size = 0x4, offset = 0x4, fixed_abs, tag = 'smem constant byte address 0x4 - core index']
  #allocation1 [shape = 'u32[144,128]{1,0:T(1,128)}', space=vmem, size = 0x12000, scoped, tag = 'internal scratch']
  %s0 = inlined_call_operand.hbm [shape: f32[256,128], index: 0, kind: input, shape index: {}]
  %s1 = inlined_call_operand.hbm [shape: f32[128,256], index: 1, kind: input, shape index: {}]
  %s2 = inlined_call_operand.hbm [shape: f32[2,8,128], index: 2, kind: output, shape index: {}]
  %s3 = sld [smem:[#allocation0]]
  $region57: #{tpu_custom_call.1} parent=0
    _
  %s5 = ssub.s32 1, %s3
  %s6 = scalar_select 0, %s5, %s3
  $region1: #{tpu_custom_call.1} parent=0
    #allocation2 [shape = 'u8[131072]{0}', space=vmem, size = 0x20000, scoped, tag = 'input window, operand 0']
    #allocation3 [shape = 's32[2]{0}', space=sflag, size = 0x8, scoped, tag = 'scoped memory for tpu_custom_call.1']
    #allocation4 [shape = 's32[2]{0}', space=sflag, size = 0x8, scoped, tag = 'scoped memory for tpu_custom_call.1']
    #allocation5 [shape = 'u8[131072]{0}', space=vmem, size = 0x20000, scoped, tag = 'input window, operand 1']
    #allocation6 [shape = 's32[2]{0}', space=sflag, size = 0x8, scoped, tag = 'scoped memory for tpu_custom_call.1']
    #allocation7 [shape = 'u8[8192]{0}', space=vmem, size = 0x2000, scoped, tag = 'output window, operand 0']
    %7 = vsyncpa [#allocation3], 0
    %s8 = scalar_lea.sflag [#allocation3], 1
    %9 = vsyncpa %s8, 0
    %10 = vsyncpa [#allocation6], 0
    %s11 = scalar_lea.sflag [#allocation6], 1
    %12 = vsyncpa %s11, 0
    %13 = vsyncpa [#allocation4], 0
    %s14 = scalar_lea.sflag [#allocation4], 1
    %15 = vsyncpa %s14, 0
    loop: start=0, step=1, limit=6
    $region2: #{tpu_custom_call.1} parent=1 // loop_pre_header
      _
    $region3: #{tpu_custom_call.1} parent=1 // loop_header
      %s17 = sphi 0, %s21
      %p18 = scmp.ge.s32.totalorder %s17, 6
      %s24 = sphi 0, %s36
      %s25 = sphi 0, %s32
      %s26 = sphi 0, %s24
      %s27 = sphi 0, %s25
      %s28 = sphi 0, %s26
      %s29 = sphi 0, %s27
      %s39 = sphi 0, %s41
      %s42 = sphi 0, %s39
      %s43 = sphi 0, %s42
      %s59 = sphi 0, %s43
      %s65 = sphi 0, %s67
      %s68 = sphi 0, %s65
      %s69 = sphi 0, %s68
      %s85 = sphi 0, %s69
      %s91 = sphi 0, %s93
      %s94 = sphi 0, %s91
      %s95 = sphi 0, %s94
      %s111 = sphi 0, %s95
    $region4: #{tpu_custom_call.1} parent=1 // loop_header_branch
      %20 = sbr.rel (%p18) target = $region8
    $region5: #{tpu_custom_call.1} parent=1 // loop_body
      %s22 = ssub.s32 %s17, 1
      %s23 = ssub.s32 %s17, 2
      %s30 = sadd.s32 1, %s25
      %p31 = scmp.ge.s32.totalorder %s30, 2
      %s32 = scalar_select %p31, 0, %s30
      %s33 = sadd.s32 1, %s24
      %s34 = scalar_select %p31, %s33, %s24
      %p35 = scmp.ge.s32.totalorder %s34, 2
      %s36 = scalar_select %p35, 0, %s34
      %s37 = ssub.s32 %s24, %s36
      %p38 = scmp.eq.s32.totalorder %s37, 0
      %s40 = sadd.s32 %s39, 1
      %s41 = scalar_select %p38, %s39, %s40
      %p44 = pneg %p38
      %p45 = scmp.eq.s32.totalorder %s17, 3
      %p46 = por %p44, %p45
      %p47 = scmp.ne.s32.totalorder %s39, %s42
      %p48 = scmp.eq.s32.totalorder %s17, 0
      %p49 = por %p47, %p48
      %p50 = scmp.ne.s32.totalorder %s39, %s42
      %p51 = scmp.eq.s32.totalorder %s22, 3
      %p52 = por %p50, %p51
      %p53 = scmp.ne.s32.totalorder %s42, %s43
      %p54 = scmp.eq.s32.totalorder %s22, 0
      %p55 = por %p53, %p54
      %p56 = scmp.ne.s32.totalorder %s42, %s43
      %p57 = scmp.eq.s32.totalorder %s23, 3
      %p58 = por %p56, %p57
      %p60 = scmp.ne.s32.totalorder %s43, %s59
      %p61 = scmp.eq.s32.totalorder %s23, 0
      %p62 = por %p60, %p61
      %s63 = ssub.s32 %s25, %s32
      %p64 = scmp.eq.s32.totalorder %s63, 0
      %s66 = sadd.s32 %s65, 1
      %s67 = scalar_select %p64, %s65, %s66
      %p70 = pneg %p64
      %p71 = scmp.eq.s32.totalorder %s17, 3
      %p72 = por %p70, %p71
      %p73 = scmp.ne.s32.totalorder %s65, %s68
      %p74 = scmp.eq.s32.totalorder %s17, 0
      %p75 = por %p73, %p74
      %p76 = scmp.ne.s32.totalorder %s65, %s68
      %p77 = scmp.eq.s32.totalorder %s22, 3
      %p78 = por %p76, %p77
      %p79 = scmp.ne.s32.totalorder %s68, %s69
      %p80 = scmp.eq.s32.totalorder %s22, 0
      %p81 = por %p79, %p80
      %p82 = scmp.ne.s32.totalorder %s68, %s69
      %p83 = scmp.eq.s32.totalorder %s23, 3
      %p84 = por %p82, %p83
      %p86 = scmp.ne.s32.totalorder %s69, %s85
      %p87 = scmp.eq.s32.totalorder %s23, 0
      %p88 = por %p86, %p87
      %s89 = ssub.s32 %s24, %s36
      %p90 = scmp.eq.s32.totalorder %s89, 0
      %s92 = sadd.s32 %s91, 1
      %s93 = scalar_select %p90, %s91, %s92
      %p96 = pneg %p90
      %p97 = scmp.eq.s32.totalorder %s17, 3
      %p98 = por %p96, %p97
      %p99 = scmp.ne.s32.totalorder %s91, %s94
      %p100 = scmp.eq.s32.totalorder %s17, 0
      %p101 = por %p99, %p100
      %p102 = scmp.ne.s32.totalorder %s91, %s94
      %p103 = scmp.eq.s32.totalorder %s22, 3
      %p104 = por %p102, %p103
      %p105 = scmp.ne.s32.totalorder %s94, %s95
      %p106 = scmp.eq.s32.totalorder %s22, 0
      %p107 = por %p105, %p106
      %p108 = scmp.ne.s32.totalorder %s94, %s95
      %p109 = scmp.eq.s32.totalorder %s23, 3
      %p110 = por %p108, %p109
      %p112 = scmp.ne.s32.totalorder %s95, %s111
      %p113 = scmp.eq.s32.totalorder %s23, 0
      %p114 = por %p112, %p113
      %p115 = scmp.le.s32.totalorder 1, %s17
      %p116 = scmp.lt.s32.totalorder %s17, 5
      %p117 = pnand %p115, %p116
      %p118 = pneg %p117
      // Predicated region
      $region9: #{tpu_custom_call.1} parent=5 // pred_check
        _
      $region10: #{tpu_custom_call.1} parent=5 // pred_check_branch
        %120 = sbr.rel (%p117) target = $region12
      $region11: #{tpu_custom_call.1} parent=5 // pred_region
        %s121 = ssub.s32 %s17, 1
      $region12: #{tpu_custom_call.1} parent=5 // pred_fallthru
        _
      %p122 = scmp.lt.s32.totalorder %s17, 4
      // Predicated region
      $region13: #{tpu_custom_call.1} parent=5 // pred_check
        %p123 = pneg %p122
      $region14: #{tpu_custom_call.1} parent=5 // pred_check_branch
        %125 = sbr.rel (%p123) target = $region16
      $region15: #{tpu_custom_call.1} parent=5 // pred_region
        // Predicated region
        $region17: #{tpu_custom_call.1} parent=15 // pred_check
          %p126 = pneg %p49
        $region18: #{tpu_custom_call.1} parent=15 // pred_check_branch
          %128 = sbr.rel (%p126) target = $region20
        $region19: #{tpu_custom_call.1} parent=15 // pred_region
          %s129 = sand.u32 %s39, 1
          %s130 = scalar_lea.sflag [#allocation3], %s129
          %s131 = sand.u32 %s39, 1
          %s132 = smul.addr %s131, 128
          %s133 = scalar_lea.vmem [#allocation2], %s132
          %s134 = smul.u32 16, %s24
          %s136 = ssub.s32 2048, 2048
          %137 = vsyncadd %s130, %s136
          %s138 = smul.addr %s134, 128
          %s139 = scalar_lea.hbm %s0, %s138
          %s140 = sshll.u32 %s133, 4
          %s141 = int_to_ptr.vmem [resolvable:$true] %s140
          %146 = dma.hbm_to_vmem [thread:$0]  %s139, 2048, %s141, %s130, 128, 128, 8
        $region20: #{tpu_custom_call.1} parent=15 // pred_fallthru
          _
        // Predicated region
        $region21: #{tpu_custom_call.1} parent=15 // pred_check
          %p147 = pneg %p75
        $region22: #{tpu_custom_call.1} parent=15 // pred_check_branch
          %149 = sbr.rel (%p147) target = $region24
        $region23: #{tpu_custom_call.1} parent=15 // pred_region
          %s150 = sand.u32 %s65, 1
          %s151 = scalar_lea.sflag [#allocation6], %s150
          %s152 = sand.u32 %s65, 1
          %s153 = smul.addr %s152, 128
          %s154 = scalar_lea.vmem [#allocation5], %s153
          %s156 = ssub.s32 2048, 2048
          %157 = vsyncadd %s151, %s156
          %s158 = smul.addr %s25, 128
          %s159 = scalar_lea.hbm %s1, %s158
          %s160 = sshll.u32 %s154, 4
          %s161 = int_to_ptr.vmem [resolvable:$true] %s160
          %166 = dma.hbm_to_vmem [thread:$0]  %s159, 2048, %s161, %s151, 256, 128, 8
        $region24: #{tpu_custom_call.1} parent=15 // pred_fallthru
          _
      $region16: #{tpu_custom_call.1} parent=5 // pred_fallthru
        _
      %p167 = scmp.le.s32.totalorder 1, %s17
      %p168 = scmp.lt.s32.totalorder %s17, 5
      %p169 = pnand %p167, %p168
      %p170 = pneg %p169
      // Predicated region
      $region25: #{tpu_custom_call.1} parent=5 // pred_check
        _
      $region26: #{tpu_custom_call.1} parent=5 // pred_check_branch
        %172 = sbr.rel (%p169) target = $region28
      $region27: #{tpu_custom_call.1} parent=5 // pred_region
        %s173 = ssub.s32 %s17, 1
        %s174 = sand.u32 %s42, 1
        %s175 = scalar_lea.sflag [#allocation3], %s174
        %s176 = sand.u32 %s42, 1
        %s177 = smul.addr %s176, 128
        %s178 = scalar_lea.vmem [#allocation2], %s177
        // Predicated region
        $region29: #{tpu_custom_call.1} parent=27 // pred_check
          %p179 = pneg %p55
        $region30: #{tpu_custom_call.1} parent=27 // pred_check_branch
          %181 = sbr.rel (%p179) target = $region32
        $region31: #{tpu_custom_call.1} parent=27 // pred_region
          %182 = dma.done %s175, 2048
        $region32: #{tpu_custom_call.1} parent=27 // pred_fallthru
          _
        %s183 = sand.u32 %s68, 1
        %s184 = scalar_lea.sflag [#allocation6], %s183
        %s185 = sand.u32 %s68, 1
        %s186 = smul.addr %s185, 128
        %s187 = scalar_lea.vmem [#allocation5], %s186
        // Predicated region
        $region33: #{tpu_custom_call.1} parent=27 // pred_check
          %p188 = pneg %p81
        $region34: #{tpu_custom_call.1} parent=27 // pred_check_branch
          %190 = sbr.rel (%p188) target = $region36
        $region35: #{tpu_custom_call.1} parent=27 // pred_region
          %191 = dma.done %s184, 2048
        $region36: #{tpu_custom_call.1} parent=27 // pred_fallthru
          _
        %s192 = sand.u32 %s42, 1
        %s193 = scalar_lea.sflag [#allocation3], %s192
        %s194 = sand.u32 %s42, 1
        %s195 = smul.addr %s194, 128
        %s196 = scalar_lea.vmem [#allocation2], %s195
        %p197 = pneg %p55
        %p198 = pneg %p52
        %s199 = sand.u32 %s68, 1
        %s200 = scalar_lea.sflag [#allocation6], %s199
        %s201 = sand.u32 %s68, 1
        %s202 = smul.addr %s201, 128
        %s203 = scalar_lea.vmem [#allocation5], %s202
        %p204 = pneg %p81
        %p205 = pneg %p78
        %p206 = pneg %p107
        %p207 = pneg %p104
        %s208 = sand.u32 %s94, 1
        %s209 = scalar_lea.sflag [#allocation4], %s208
        %s210 = sand.u32 %s94, 1
        %s211 = smul.addr %s210, 8
        %s212 = scalar_lea.vmem [#allocation7], %s211
        %s213 = smul.u32 16, %s26
        %p214 = scmp.eq.s32.totalorder %s27, 0
        // Predicated region
        $region37: #{tpu_custom_call.1} parent=27 // pred_check
          %p215 = pneg %p214
        $region38: #{tpu_custom_call.1} parent=27 // pred_check_branch
          %217 = sbr.rel (%p215) target = $region40
        $region39: #{tpu_custom_call.1} parent=27 // pred_region
          %218 = vst [vmem:[%s212] sm:$0xff] 0.0
        $region40: #{tpu_custom_call.1} parent=27 // pred_fallthru
          _
        %p219 = scmp.ge.s32.totalorder %s27, %s26
        // Predicated region
        $region41: #{tpu_custom_call.1} parent=27 // pred_check
          %p220 = pneg %p219
        $region42: #{tpu_custom_call.1} parent=27 // pred_check_branch
          %222 = sbr.rel (%p220) target = $region44
        $region43: #{tpu_custom_call.1} parent=27 // pred_region
          %v223 = vld [vmem:[%s178] sm:$0xff]
          %v224 = vld [vmem:[%s178 + $0x8] sm:$0xff]
          %v225 = vld [vmem:[%s178 + $0x10] sm:$0xff]
          %v226 = vld [vmem:[%s178 + $0x18] sm:$0xff]
          %v227 = vld [vmem:[%s178 + $0x20] sm:$0xff]
          %v228 = vld [vmem:[%s178 + $0x28] sm:$0xff]
          %v229 = vld [vmem:[%s178 + $0x30] sm:$0xff]
          %v230 = vld [vmem:[%s178 + $0x38] sm:$0xff]
          %v231 = vld [vmem:[%s178 + $0x40] sm:$0xff]
          %v232 = vld [vmem:[%s178 + $0x48] sm:$0xff]
          %v233 = vld [vmem:[%s178 + $0x50] sm:$0xff]
          %v234 = vld [vmem:[%s178 + $0x58] sm:$0xff]
          %v235 = vld [vmem:[%s178 + $0x60] sm:$0xff]
          %v236 = vld [vmem:[%s178 + $0x68] sm:$0xff]
          %v237 = vld [vmem:[%s178 + $0x70] sm:$0xff]
          %v238 = vld [vmem:[%s178 + $0x78] sm:$0xff]
          %v239 = vld [vmem:[%s187] sm:$0xff]
          %v240 = vld [vmem:[%s187 + $0x8] sm:$0xff]
          %v241 = vld [vmem:[%s187 + $0x10] sm:$0xff]
          %v242 = vld [vmem:[%s187 + $0x18] sm:$0xff]
          %v243 = vld [vmem:[%s187 + $0x20] sm:$0xff]
          %v244 = vld [vmem:[%s187 + $0x28] sm:$0xff]
          %v245 = vld [vmem:[%s187 + $0x30] sm:$0xff]
          %v246 = vld [vmem:[%s187 + $0x38] sm:$0xff]
          %v247 = vld [vmem:[%s187 + $0x40] sm:$0xff]
          %v248 = vld [vmem:[%s187 + $0x48] sm:$0xff]
          %v249 = vld [vmem:[%s187 + $0x50] sm:$0xff]
          %v250 = vld [vmem:[%s187 + $0x58] sm:$0xff]
          %v251 = vld [vmem:[%s187 + $0x60] sm:$0xff]
          %v252 = vld [vmem:[%s187 + $0x68] sm:$0xff]
          %v253 = vld [vmem:[%s187 + $0x70] sm:$0xff]
          %v254 = vld [vmem:[%s187 + $0x78] sm:$0xff]
          %255 = vmatprep.subr.mxu0 0.0
          %256 = vmatpush1.msra.mxu0 %v239
          %257 = vmatprep.subr.mxu0 0.0
          %258 = vmatpush1.msra.mxu0 %v240
          %259 = vmatprep.subr.mxu0 0.0
          %260 = vmatpush1.msra.mxu0 %v241
          %261 = vmatprep.subr.mxu0 0.0
          %262 = vmatpush1.msra.mxu0 %v242
          %263 = vmatprep.subr.mxu0 0.0
          %264 = vmatpush1.msra.mxu0 %v243
          %265 = vmatprep.subr.mxu0 0.0
          %266 = vmatpush1.msra.mxu0 %v244
          %267 = vmatprep.subr.mxu0 0.0
          %268 = vmatpush1.msra.mxu0 %v245
          %269 = vmatprep.subr.mxu0 0.0
          %270 = vmatpush1.msra.mxu0 %v246
          %271 = vmatprep.subr.mxu0 0.0
          %272 = vmatpush1.msra.mxu0 %v247
          %273 = vmatprep.subr.mxu0 0.0
          %274 = vmatpush1.msra.mxu0 %v248
          %275 = vmatprep.subr.mxu0 0.0
          %276 = vmatpush1.msra.mxu0 %v249
          %277 = vmatprep.subr.mxu0 0.0
          %278 = vmatpush1.msra.mxu0 %v250
          %279 = vmatprep.subr.mxu0 0.0
          %280 = vmatpush1.msra.mxu0 %v251
          %281 = vmatprep.subr.mxu0 0.0
          %282 = vmatpush1.msra.mxu0 %v252
          %283 = vmatprep.subr.mxu0 0.0
          %284 = vmatpush1.msra.mxu0 %v253
          %285 = vmatprep.subr.mxu0 0.0
          %286 = vmatpush1.msra.mxu0 %v254
          %287 = vmatprep.subr.mxu0 0.0
          %288 = vmatpush1.msra.mxu0 0.0
          %289 = vmatprep.subr.mxu0 0.0
          %290 = vmatpush1.msra.mxu0 0.0
          %291 = vmatprep.subr.mxu0 0.0
          %292 = vmatpush1.msra.mxu0 0.0
          %293 = vmatprep.subr.mxu0 0.0
          %294 = vmatpush1.msra.mxu0 0.0
          %295 = vmatprep.subr.mxu0 0.0
          %296 = vmatpush1.msra.mxu0 0.0
          %297 = vmatprep.subr.mxu0 0.0
          %298 = vmatpush1.msra.mxu0 0.0
          %299 = vmatprep.subr.mxu0 0.0
          %300 = vmatpush1.msra.mxu0 0.0
          %301 = vmatprep.subr.mxu0 0.0
          %302 = vmatpush1.msra.mxu0 0.0
          %303 = vmatprep.subr.mxu0 0.0
          %304 = vmatpush1.msra.mxu0 0.0
          %305 = vmatprep.subr.mxu0 0.0
          %306 = vmatpush1.msra.mxu0 0.0
          %307 = vmatprep.subr.mxu0 0.0
          %308 = vmatpush1.msra.mxu0 0.0
          %309 = vmatprep.subr.mxu0 0.0
          %310 = vmatpush1.msra.mxu0 0.0
          %311 = vmatprep.subr.mxu0 0.0
          %312 = vmatpush1.msra.mxu0 0.0
          %313 = vmatprep.subr.mxu0 0.0
          %314 = vmatpush1.msra.mxu0 0.0
          %315 = vmatprep.subr.mxu0 0.0
          %316 = vmatpush1.msra.mxu0 0.0
          %317 = vmatprep.subr.mxu0 0.0
          %318 = vmatpush1.msra.mxu0 0.0
          %319 = vmatprep.mubr.f32.mxu0 0.0
          %320 = vmatmul.mubr.f32.gmra.mrb[0].mxu0 %v223
          %v321 = vpop.f32.mrb[0].mxu0
          %v322 = vadd.f32 0.0, %v321
          %v323 = vpop.f32.mrb[0].mxu0
          %324 = vmatprep.mubr.f32.mxu0 0.0
          %325 = vmatmul.mubr.f32.gmra.mrb[0].mxu0 %v224
          %v326 = vpop.f32.mrb[0].mxu0
          %v327 = vadd.f32 0.0, %v326
          %v328 = vpop.f32.mrb[0].mxu0
          %329 = vmatprep.mubr.f32.mxu0 0.0
          %330 = vmatmul.mubr.f32.gmra.mrb[0].mxu0 %v225
          %v331 = vpop.f32.mrb[0].mxu0
          %v332 = vadd.f32 0.0, %v331
          %v333 = vpop.f32.mrb[0].mxu0
          %334 = vmatprep.mubr.f32.mxu0 0.0
          %335 = vmatmul.mubr.f32.gmra.mrb[0].mxu0 %v226
          %v336 = vpop.f32.mrb[0].mxu0
          %v337 = vadd.f32 0.0, %v336
          %v338 = vpop.f32.mrb[0].mxu0
          %339 = vmatprep.mubr.f32.mxu0 0.0
          %340 = vmatmul.mubr.f32.gmra.mrb[0].mxu0 %v227
          %v341 = vpop.f32.mrb[0].mxu0
          %v342 = vadd.f32 0.0, %v341
          %v343 = vpop.f32.mrb[0].mxu0
          %344 = vmatprep.mubr.f32.mxu0 0.0
          %345 = vmatmul.mubr.f32.gmra.mrb[0].mxu0 %v228
          %v346 = vpop.f32.mrb[0].mxu0
          %v347 = vadd.f32 0.0, %v346
          %v348 = vpop.f32.mrb[0].mxu0
          %349 = vmatprep.mubr.f32.mxu0 0.0
          %350 = vmatmul.mubr.f32.gmra.mrb[0].mxu0 %v229
          %v351 = vpop.f32.mrb[0].mxu0
          %v352 = vadd.f32 0.0, %v351
          %v353 = vpop.f32.mrb[0].mxu0
          %354 = vmatprep.mubr.f32.mxu0 0.0
          %355 = vmatmul.mubr.f32.gmra.mrb[0].mxu0 %v230
          %v356 = vpop.f32.mrb[0].mxu0
          %v357 = vadd.f32 0.0, %v356
          %v358 = vpop.f32.mrb[0].mxu0
          %359 = vmatprep.mubr.f32.mxu0 0.0
          %360 = vmatmul.mubr.f32.gmra.mrb[0].mxu0 %v231
          %v361 = vpop.f32.mrb[0].mxu0
          %v362 = vadd.f32 0.0, %v361
          %v363 = vpop.f32.mrb[0].mxu0
          %364 = vmatprep.mubr.f32.mxu0 0.0
          %365 = vmatmul.mubr.f32.gmra.mrb[0].mxu0 %v232
          %v366 = vpop.f32.mrb[0].mxu0
          %v367 = vadd.f32 0.0, %v366
          %v368 = vpop.f32.mrb[0].mxu0
          %369 = vmatprep.mubr.f32.mxu0 0.0
          %370 = vmatmul.mubr.f32.gmra.mrb[0].mxu0 %v233
          %v371 = vpop.f32.mrb[0].mxu0
          %v372 = vadd.f32 0.0, %v371
          %v373 = vpop.f32.mrb[0].mxu0
          %374 = vmatprep.mubr.f32.mxu0 0.0
          %375 = vmatmul.mubr.f32.gmra.mrb[0].mxu0 %v234
          %v376 = vpop.f32.mrb[0].mxu0
          %v377 = vadd.f32 0.0, %v376
          %v378 = vpop.f32.mrb[0].mxu0
          %379 = vmatprep.mubr.f32.mxu0 0.0
          %380 = vmatmul.mubr.f32.gmra.mrb[0].mxu0 %v235
          %v381 = vpop.f32.mrb[0].mxu0
          %v382 = vadd.f32 0.0, %v381
          %v383 = vpop.f32.mrb[0].mxu0
          %384 = vmatprep.mubr.f32.mxu0 0.0
          %385 = vmatmul.mubr.f32.gmra.mrb[0].mxu0 %v236
          %v386 = vpop.f32.mrb[0].mxu0
          %v387 = vadd.f32 0.0, %v386
          %v388 = vpop.f32.mrb[0].mxu0
          %389 = vmatprep.mubr.f32.mxu0 0.0
          %390 = vmatmul.mubr.f32.gmra.mrb[0].mxu0 %v237
          %v391 = vpop.f32.mrb[0].mxu0
          %v392 = vadd.f32 0.0, %v391
          %v393 = vpop.f32.mrb[0].mxu0
          %394 = vmatprep.mubr.f32.mxu0 0.0
          %395 = vmatmul.mubr.f32.gmra.mrb[0].mxu0 %v238
          %v396 = vpop.f32.mrb[0].mxu0
          %v397 = vadd.f32 0.0, %v396
          %v398 = vpop.f32.mrb[0].mxu0
          %399 = vdwg.mxu0
          %v400 = vmin.f32 %v322, 0.0
          %v401 = vmin.f32 %v327, 0.0
          %v402 = vmin.f32 %v332, 0.0
          %v403 = vmin.f32 %v337, 0.0
          %v404 = vmin.f32 %v342, 0.0
          %v405 = vmin.f32 %v347, 0.0
          %v406 = vmin.f32 %v352, 0.0
          %v407 = vmin.f32 %v357, 0.0
          %v408 = vmin.f32 %v362, 0.0
          %v409 = vmin.f32 %v367, 0.0
          %v410 = vmin.f32 %v372, 0.0
          %v411 = vmin.f32 %v377, 0.0
          %v412 = vmin.f32 %v382, 0.0
          %v413 = vmin.f32 %v387, 0.0
          %v414 = vmin.f32 %v392, 0.0
          %v415 = vmin.f32 %v397, 0.0
          %v416 = vmul.f32 %v400, 1.442695
          %v417 = vpow.pop %v416
          %v418 = vmul.f32 %v401, 1.442695
          %v419 = vpow.pop %v418
          %v420 = vmul.f32 %v402, 1.442695
          %v421 = vpow.pop %v420
          %v422 = vmul.f32 %v403, 1.442695
          %v423 = vpow.pop %v422
          %v424 = vmul.f32 %v404, 1.442695
          %v425 = vpow.pop %v424
          %v426 = vmul.f32 %v405, 1.442695
          %v427 = vpow.pop %v426
          %v428 = vmul.f32 %v406, 1.442695
          %v429 = vpow.pop %v428
          %v430 = vmul.f32 %v407, 1.442695
          %v431 = vpow.pop %v430
          %v432 = vmul.f32 %v408, 1.442695
          %v433 = vpow.pop %v432
          %v434 = vmul.f32 %v409, 1.442695
          %v435 = vpow.pop %v434
          %v436 = vmul.f32 %v410, 1.442695
          %v437 = vpow.pop %v436
          %v438 = vmul.f32 %v411, 1.442695
          %v439 = vpow.pop %v438
          %v440 = vmul.f32 %v412, 1.442695
          %v441 = vpow.pop %v440
          %v442 = vmul.f32 %v413, 1.442695
          %v443 = vpow.pop %v442
          %v444 = vmul.f32 %v414, 1.442695
          %v445 = vpow.pop %v444
          %v446 = vmul.f32 %v415, 1.442695
          %v447 = vpow.pop %v446
          %v448 = vmul.f32 %v417, %v417
          %v449 = vmul.f32 %v419, %v419
          %v450 = vmul.f32 %v421, %v421
          %v451 = vmul.f32 %v423, %v423
          %v452 = vmul.f32 %v425, %v425
          %v453 = vmul.f32 %v427, %v427
          %v454 = vmul.f32 %v429, %v429
          %v455 = vmul.f32 %v431, %v431
          %v456 = vmul.f32 %v433, %v433
          %v457 = vmul.f32 %v435, %v435
          %v458 = vmul.f32 %v437, %v437
          %v459 = vmul.f32 %v439, %v439
          %v460 = vmul.f32 %v441, %v441
          %v461 = vmul.f32 %v443, %v443
          %v462 = vmul.f32 %v445, %v445
          %v463 = vmul.f32 %v447, %v447
          %v464 = vadd.f32 %v417, %v448
          %v465 = vadd.f32 %v419, %v449
          %v466 = vadd.f32 %v421, %v450
          %v467 = vadd.f32 %v423, %v451
          %v468 = vadd.f32 %v425, %v452
          %v469 = vadd.f32 %v427, %v453
          %v470 = vadd.f32 %v429, %v454
          %v471 = vadd.f32 %v431, %v455
          %v472 = vadd.f32 %v433, %v456
          %v473 = vadd.f32 %v435, %v457
          %v474 = vadd.f32 %v437, %v458
          %v475 = vadd.f32 %v439, %v459
          %v476 = vadd.f32 %v441, %v460
          %v477 = vadd.f32 %v443, %v461
          %v478 = vadd.f32 %v445, %v462
          %v479 = vadd.f32 %v447, %v463
          %v480 = vmul.f32 %v448, %v448
          %v481 = vmul.f32 %v449, %v449
          %v482 = vmul.f32 %v450, %v450
          %v483 = vmul.f32 %v451, %v451
          %v484 = vmul.f32 %v452, %v452
          %v485 = vmul.f32 %v453, %v453
          %v486 = vmul.f32 %v454, %v454
          %v487 = vmul.f32 %v455, %v455
          %v488 = vmul.f32 %v456, %v456
          %v489 = vmul.f32 %v457, %v457
          %v490 = vmul.f32 %v458, %v458
          %v491 = vmul.f32 %v459, %v459
          %v492 = vmul.f32 %v460, %v460
          %v493 = vmul.f32 %v461, %v461
          %v494 = vmul.f32 %v462, %v462
          %v495 = vmul.f32 %v463, %v463
          %v496 = vadd.f32 %v464, %v480
          %v497 = vadd.f32 %v465, %v481
          %v498 = vadd.f32 %v466, %v482
          %v499 = vadd.f32 %v467, %v483
          %v500 = vadd.f32 %v468, %v484
          %v501 = vadd.f32 %v469, %v485
          %v502 = vadd.f32 %v470, %v486
          %v503 = vadd.f32 %v471, %v487
          %v504 = vadd.f32 %v472, %v488
          %v505 = vadd.f32 %v473, %v489
          %v506 = vadd.f32 %v474, %v490
          %v507 = vadd.f32 %v475, %v491
          %v508 = vadd.f32 %v476, %v492
          %v509 = vadd.f32 %v477, %v493
          %v510 = vadd.f32 %v478, %v494
          %v511 = vadd.f32 %v479, %v495
          %v512 = vmul.f32 %v480, %v480
          %v513 = vmul.f32 %v481, %v481
          %v514 = vmul.f32 %v482, %v482
          %v515 = vmul.f32 %v483, %v483
          %v516 = vmul.f32 %v484, %v484
          %v517 = vmul.f32 %v485, %v485
          %v518 = vmul.f32 %v486, %v486
          %v519 = vmul.f32 %v487, %v487
          %v520 = vmul.f32 %v488, %v488
          %v521 = vmul.f32 %v489, %v489
          %v522 = vmul.f32 %v490, %v490
          %v523 = vmul.f32 %v491, %v491
          %v524 = vmul.f32 %v492, %v492
          %v525 = vmul.f32 %v493, %v493
          %v526 = vmul.f32 %v494, %v494
          %v527 = vmul.f32 %v495, %v495
          %v528 = vadd.f32 %v496, %v512
          %v529 = vadd.f32 %v497, %v513
          %v530 = vadd.f32 %v498, %v514
          %v531 = vadd.f32 %v499, %v515
          %v532 = vadd.f32 %v500, %v516
          %v533 = vadd.f32 %v501, %v517
          %v534 = vadd.f32 %v502, %v518
          %v535 = vadd.f32 %v503, %v519
          %v536 = vadd.f32 %v504, %v520
          %v537 = vadd.f32 %v505, %v521
          %v538 = vadd.f32 %v506, %v522
          %v539 = vadd.f32 %v507, %v523
          %v540 = vadd.f32 %v508, %v524
          %v541 = vadd.f32 %v509, %v525
          %v542 = vadd.f32 %v510, %v526
          %v543 = vadd.f32 %v511, %v527
          %v544 = vmul.f32 %v512, %v512
          %v545 = vmul.f32 %v513, %v513
          %v546 = vmul.f32 %v514, %v514
          %v547 = vmul.f32 %v515, %v515
          %v548 = vmul.f32 %v516, %v516
          %v549 = vmul.f32 %v517, %v517
          %v550 = vmul.f32 %v518, %v518
          %v551 = vmul.f32 %v519, %v519
          %v552 = vmul.f32 %v520, %v520
          %v553 = vmul.f32 %v521, %v521
          %v554 = vmul.f32 %v522, %v522
          %v555 = vmul.f32 %v523, %v523
          %v556 = vmul.f32 %v524, %v524
          %v557 = vmul.f32 %v525, %v525
          %v558 = vmul.f32 %v526, %v526
          %v559 = vmul.f32 %v527, %v527
          %v560 = vadd.f32 %v528, %v544
          %v561 = vadd.f32 %v529, %v545
          %v562 = vadd.f32 %v530, %v546
          %v563 = vadd.f32 %v531, %v547
          %v564 = vadd.f32 %v532, %v548
          %v565 = vadd.f32 %v533, %v549
          %v566 = vadd.f32 %v534, %v550
          %v567 = vadd.f32 %v535, %v551
          %v568 = vadd.f32 %v536, %v552
          %v569 = vadd.f32 %v537, %v553
          %v570 = vadd.f32 %v538, %v554
          %v571 = vadd.f32 %v539, %v555
          %v572 = vadd.f32 %v540, %v556
          %v573 = vadd.f32 %v541, %v557
          %v574 = vadd.f32 %v542, %v558
          %v575 = vadd.f32 %v543, %v559
          %p576 = scmp.lt.s32.totalorder %s26, 1
          %p577 = scmp.lt.s32.totalorder %s27, 1
          %p578 = pneg %p576
          %p579 = pneg %p577
          %p580 = pnand %p576, %p579
          %p581 = pneg %p580
          %p582 = pnand %p578, %p577
          %p583 = pneg %p582
          %p584 = por %p581, %p583
          %s585 = scalar_select %p584, -1.0, 1.0
          %p586 = scmp.eq.s32.totalorder %s26, %s27
          %s587 = scalar_select %p586, 1.0, 2.0
          %s588 = smul.f32 %s585, %s587
          %v605 = vcombine.high %v560, %v560
          %v607 = vunpack.c.l.s4 1966171168
          %v608 = vunpack.c.0.s8 %v607
          %v609 = vlaneseq
          %v610 = vshrl.u32 %v609, 7
          %v611 = vsub.s32 %v608, %v610
          %v612 = vrot.slane %v560, %v611
          %v614 = vunpack.c.l.s4 1966171168
          %v615 = vunpack.c.0.s8 %v614
          %v616 = vlaneseq
          %v617 = vshrl.u32 %v616, 7
          %v618 = vsub.s32 %v615, %v617
          %v619 = vrot.slane %v605, %v618
          %v620 = vcombine.high %v612, %v612
          %v621 = vcombine.high %v619, %v619
          %v623 = vunpack.c.l.s4 1966171168
          %v624 = vunpack.c.0.s8 %v623
          %v625 = vlaneseq
          %v626 = vshrl.u32 %v625, 7
          %v627 = vsub.s32 %v624, %v626
          %v628 = vrot.slane %v612, %v627
          %v630 = vunpack.c.l.s4 1966171168
          %v631 = vunpack.c.0.s8 %v630
          %v632 = vlaneseq
          %v633 = vshrl.u32 %v632, 7
          %v634 = vsub.s32 %v631, %v633
          %v635 = vrot.slane %v619, %v634
          %v637 = vunpack.c.l.s4 1966171168
          %v638 = vunpack.c.0.s8 %v637
          %v639 = vlaneseq
          %v640 = vshrl.u32 %v639, 7
          %v641 = vsub.s32 %v638, %v640
          %v642 = vrot.slane %v620, %v641
          %v644 = vunpack.c.l.s4 1966171168
          %v645 = vunpack.c.0.s8 %v644
          %v646 = vlaneseq
          %v647 = vshrl.u32 %v646, 7
          %v648 = vsub.s32 %v645, %v647
          %v649 = vrot.slane %v621, %v648
          %v650 = vcombine.high %v628, %v628
          %v651 = vcombine.high %v635, %v635
          %v652 = vcombine.high %v642, %v642
          %v653 = vcombine.high %v649, %v649
          %v654 = vcombine.high %v561, %v561
          %v656 = vunpack.c.l.s4 1966171168
          %v657 = vunpack.c.0.s8 %v656
          %v658 = vlaneseq
          %v659 = vshrl.u32 %v658, 7
          %v660 = vsub.s32 %v657, %v659
          %v661 = vrot.slane %v561, %v660
          %v663 = vunpack.c.l.s4 1966171168
          %v664 = vunpack.c.0.s8 %v663
          %v665 = vlaneseq
          %v666 = vshrl.u32 %v665, 7
          %v667 = vsub.s32 %v664, %v666
          %v668 = vrot.slane %v654, %v667
          %v669 = vcombine.high %v661, %v661
          %v670 = vcombine.high %v668, %v668
          %v672 = vunpack.c.l.s4 1966171168
          %v673 = vunpack.c.0.s8 %v672
          %v674 = vlaneseq
          %v675 = vshrl.u32 %v674, 7
          %v676 = vsub.s32 %v673, %v675
          %v677 = vrot.slane %v661, %v676
          %v679 = vunpack.c.l.s4 1966171168
          %v680 = vunpack.c.0.s8 %v679
          %v681 = vlaneseq
          %v682 = vshrl.u32 %v681, 7
          %v683 = vsub.s32 %v680, %v682
          %v684 = vrot.slane %v668, %v683
          %v686 = vunpack.c.l.s4 1966171168
          %v687 = vunpack.c.0.s8 %v686
          %v688 = vlaneseq
          %v689 = vshrl.u32 %v688, 7
          %v690 = vsub.s32 %v687, %v689
          %v691 = vrot.slane %v669, %v690
          %v693 = vunpack.c.l.s4 1966171168
          %v694 = vunpack.c.0.s8 %v693
          %v695 = vlaneseq
          %v696 = vshrl.u32 %v695, 7
          %v697 = vsub.s32 %v694, %v696
          %v698 = vrot.slane %v670, %v697
          %v699 = vcombine.high %v677, %v677
          %v700 = vcombine.high %v684, %v684
          %v701 = vcombine.high %v691, %v691
          %v702 = vcombine.high %v698, %v698
          %v703 = vcombine.high %v562, %v562
          %v705 = vunpack.c.l.s4 1966171168
          %v706 = vunpack.c.0.s8 %v705
          %v707 = vlaneseq
          %v708 = vshrl.u32 %v707, 7
          %v709 = vsub.s32 %v706, %v708
          %v710 = vrot.slane %v562, %v709
          %v712 = vunpack.c.l.s4 1966171168
          %v713 = vunpack.c.0.s8 %v712
          %v714 = vlaneseq
          %v715 = vshrl.u32 %v714, 7
          %v716 = vsub.s32 %v713, %v715
          %v717 = vrot.slane %v703, %v716
          %v718 = vcombine.high %v710, %v710
          %v719 = vcombine.high %v717, %v717
          %v721 = vunpack.c.l.s4 1966171168
          %v722 = vunpack.c.0.s8 %v721
          %v723 = vlaneseq
          %v724 = vshrl.u32 %v723, 7
          %v725 = vsub.s32 %v722, %v724
          %v726 = vrot.slane %v710, %v725
          %v728 = vunpack.c.l.s4 1966171168
          %v729 = vunpack.c.0.s8 %v728
          %v730 = vlaneseq
          %v731 = vshrl.u32 %v730, 7
          %v732 = vsub.s32 %v729, %v731
          %v733 = vrot.slane %v717, %v732
          %v735 = vunpack.c.l.s4 1966171168
          %v736 = vunpack.c.0.s8 %v735
          %v737 = vlaneseq
          %v738 = vshrl.u32 %v737, 7
          %v739 = vsub.s32 %v736, %v738
          %v740 = vrot.slane %v718, %v739
          %v742 = vunpack.c.l.s4 1966171168
          %v743 = vunpack.c.0.s8 %v742
          %v744 = vlaneseq
          %v745 = vshrl.u32 %v744, 7
          %v746 = vsub.s32 %v743, %v745
          %v747 = vrot.slane %v719, %v746
          %v748 = vcombine.high %v726, %v726
          %v749 = vcombine.high %v733, %v733
          %v750 = vcombine.high %v740, %v740
          %v751 = vcombine.high %v747, %v747
          %v752 = vcombine.high %v563, %v563
          %v754 = vunpack.c.l.s4 1966171168
          %v755 = vunpack.c.0.s8 %v754
          %v756 = vlaneseq
          %v757 = vshrl.u32 %v756, 7
          %v758 = vsub.s32 %v755, %v757
          %v759 = vrot.slane %v563, %v758
          %v761 = vunpack.c.l.s4 1966171168
          %v762 = vunpack.c.0.s8 %v761
          %v763 = vlaneseq
          %v764 = vshrl.u32 %v763, 7
          %v765 = vsub.s32 %v762, %v764
          %v766 = vrot.slane %v752, %v765
          %v767 = vcombine.high %v759, %v759
          %v768 = vcombine.high %v766, %v766
          %v770 = vunpack.c.l.s4 1966171168
          %v771 = vunpack.c.0.s8 %v770
          %v772 = vlaneseq
          %v773 = vshrl.u32 %v772, 7
          %v774 = vsub.s32 %v771, %v773
          %v775 = vrot.slane %v759, %v774
          %v777 = vunpack.c.l.s4 1966171168
          %v778 = vunpack.c.0.s8 %v777
          %v779 = vlaneseq
          %v780 = vshrl.u32 %v779, 7
          %v781 = vsub.s32 %v778, %v780
          %v782 = vrot.slane %v766, %v781
          %v784 = vunpack.c.l.s4 1966171168
          %v785 = vunpack.c.0.s8 %v784
          %v786 = vlaneseq
          %v787 = vshrl.u32 %v786, 7
          %v788 = vsub.s32 %v785, %v787
          %v789 = vrot.slane %v767, %v788
          %v791 = vunpack.c.l.s4 1966171168
          %v792 = vunpack.c.0.s8 %v791
          %v793 = vlaneseq
          %v794 = vshrl.u32 %v793, 7
          %v795 = vsub.s32 %v792, %v794
          %v796 = vrot.slane %v768, %v795
          %v797 = vcombine.high %v775, %v775
          %v798 = vcombine.high %v782, %v782
          %v799 = vcombine.high %v789, %v789
          %v800 = vcombine.high %v796, %v796
          %v801 = vcombine.high %v564, %v564
          %v803 = vunpack.c.l.s4 1966171168
          %v804 = vunpack.c.0.s8 %v803
          %v805 = vlaneseq
          %v806 = vshrl.u32 %v805, 7
          %v807 = vsub.s32 %v804, %v806
          %v808 = vrot.slane %v564, %v807
          %v810 = vunpack.c.l.s4 1966171168
          %v811 = vunpack.c.0.s8 %v810
          %v812 = vlaneseq
          %v813 = vshrl.u32 %v812, 7
          %v814 = vsub.s32 %v811, %v813
          %v815 = vrot.slane %v801, %v814
          %v816 = vcombine.high %v808, %v808
          %v817 = vcombine.high %v815, %v815
          %v819 = vunpack.c.l.s4 1966171168
          %v820 = vunpack.c.0.s8 %v819
          %v821 = vlaneseq
          %v822 = vshrl.u32 %v821, 7
          %v823 = vsub.s32 %v820, %v822
          %v824 = vrot.slane %v808, %v823
          %v826 = vunpack.c.l.s4 1966171168
          %v827 = vunpack.c.0.s8 %v826
          %v828 = vlaneseq
          %v829 = vshrl.u32 %v828, 7
          %v830 = vsub.s32 %v827, %v829
          %v831 = vrot.slane %v815, %v830
          %v833 = vunpack.c.l.s4 1966171168
          %v834 = vunpack.c.0.s8 %v833
          %v835 = vlaneseq
          %v836 = vshrl.u32 %v835, 7
          %v837 = vsub.s32 %v834, %v836
          %v838 = vrot.slane %v816, %v837
          %v840 = vunpack.c.l.s4 1966171168
          %v841 = vunpack.c.0.s8 %v840
          %v842 = vlaneseq
          %v843 = vshrl.u32 %v842, 7
          %v844 = vsub.s32 %v841, %v843
          %v845 = vrot.slane %v817, %v844
          %v846 = vcombine.high %v824, %v824
          %v847 = vcombine.high %v831, %v831
          %v848 = vcombine.high %v838, %v838
          %v849 = vcombine.high %v845, %v845
          %v850 = vcombine.high %v565, %v565
          %v852 = vunpack.c.l.s4 1966171168
          %v853 = vunpack.c.0.s8 %v852
          %v854 = vlaneseq
          %v855 = vshrl.u32 %v854, 7
          %v856 = vsub.s32 %v853, %v855
          %v857 = vrot.slane %v565, %v856
          %v859 = vunpack.c.l.s4 1966171168
          %v860 = vunpack.c.0.s8 %v859
          %v861 = vlaneseq
          %v862 = vshrl.u32 %v861, 7
          %v863 = vsub.s32 %v860, %v862
          %v864 = vrot.slane %v850, %v863
          %v865 = vcombine.high %v857, %v857
          %v866 = vcombine.high %v864, %v864
          %v868 = vunpack.c.l.s4 1966171168
          %v869 = vunpack.c.0.s8 %v868
          %v870 = vlaneseq
          %v871 = vshrl.u32 %v870, 7
          %v872 = vsub.s32 %v869, %v871
          %v873 = vrot.slane %v857, %v872
          %v875 = vunpack.c.l.s4 1966171168
          %v876 = vunpack.c.0.s8 %v875
          %v877 = vlaneseq
          %v878 = vshrl.u32 %v877, 7
          %v879 = vsub.s32 %v876, %v878
          %v880 = vrot.slane %v864, %v879
          %v882 = vunpack.c.l.s4 1966171168
          %v883 = vunpack.c.0.s8 %v882
          %v884 = vlaneseq
          %v885 = vshrl.u32 %v884, 7
          %v886 = vsub.s32 %v883, %v885
          %v887 = vrot.slane %v865, %v886
          %v889 = vunpack.c.l.s4 1966171168
          %v890 = vunpack.c.0.s8 %v889
          %v891 = vlaneseq
          %v892 = vshrl.u32 %v891, 7
          %v893 = vsub.s32 %v890, %v892
          %v894 = vrot.slane %v866, %v893
          %v895 = vcombine.high %v873, %v873
          %v896 = vcombine.high %v880, %v880
          %v897 = vcombine.high %v887, %v887
          %v898 = vcombine.high %v894, %v894
          %v899 = vcombine.high %v566, %v566
          %v901 = vunpack.c.l.s4 1966171168
          %v902 = vunpack.c.0.s8 %v901
          %v903 = vlaneseq
          %v904 = vshrl.u32 %v903, 7
          %v905 = vsub.s32 %v902, %v904
          %v906 = vrot.slane %v566, %v905
          %v908 = vunpack.c.l.s4 1966171168
          %v909 = vunpack.c.0.s8 %v908
          %v910 = vlaneseq
          %v911 = vshrl.u32 %v910, 7
          %v912 = vsub.s32 %v909, %v911
          %v913 = vrot.slane %v899, %v912
          %v914 = vcombine.high %v906, %v906
          %v915 = vcombine.high %v913, %v913
          %v917 = vunpack.c.l.s4 1966171168
          %v918 = vunpack.c.0.s8 %v917
          %v919 = vlaneseq
          %v920 = vshrl.u32 %v919, 7
          %v921 = vsub.s32 %v918, %v920
          %v922 = vrot.slane %v906, %v921
          %v924 = vunpack.c.l.s4 1966171168
          %v925 = vunpack.c.0.s8 %v924
          %v926 = vlaneseq
          %v927 = vshrl.u32 %v926, 7
          %v928 = vsub.s32 %v925, %v927
          %v929 = vrot.slane %v913, %v928
          %v931 = vunpack.c.l.s4 1966171168
          %v932 = vunpack.c.0.s8 %v931
          %v933 = vlaneseq
          %v934 = vshrl.u32 %v933, 7
          %v935 = vsub.s32 %v932, %v934
          %v936 = vrot.slane %v914, %v935
          %v938 = vunpack.c.l.s4 1966171168
          %v939 = vunpack.c.0.s8 %v938
          %v940 = vlaneseq
          %v941 = vshrl.u32 %v940, 7
          %v942 = vsub.s32 %v939, %v941
          %v943 = vrot.slane %v915, %v942
          %v944 = vcombine.high %v922, %v922
          %v945 = vcombine.high %v929, %v929
          %v946 = vcombine.high %v936, %v936
          %v947 = vcombine.high %v943, %v943
          %v948 = vcombine.high %v567, %v567
          %v950 = vunpack.c.l.s4 1966171168
          %v951 = vunpack.c.0.s8 %v950
          %v952 = vlaneseq
          %v953 = vshrl.u32 %v952, 7
          %v954 = vsub.s32 %v951, %v953
          %v955 = vrot.slane %v567, %v954
          %v957 = vunpack.c.l.s4 1966171168
          %v958 = vunpack.c.0.s8 %v957
          %v959 = vlaneseq
          %v960 = vshrl.u32 %v959, 7
          %v961 = vsub.s32 %v958, %v960
          %v962 = vrot.slane %v948, %v961
          %v963 = vcombine.high %v955, %v955
          %v964 = vcombine.high %v962, %v962
          %v966 = vunpack.c.l.s4 1966171168
          %v967 = vunpack.c.0.s8 %v966
          %v968 = vlaneseq
          %v969 = vshrl.u32 %v968, 7
          %v970 = vsub.s32 %v967, %v969
          %v971 = vrot.slane %v955, %v970
          %v973 = vunpack.c.l.s4 1966171168
          %v974 = vunpack.c.0.s8 %v973
          %v975 = vlaneseq
          %v976 = vshrl.u32 %v975, 7
          %v977 = vsub.s32 %v974, %v976
          %v978 = vrot.slane %v962, %v977
          %v980 = vunpack.c.l.s4 1966171168
          %v981 = vunpack.c.0.s8 %v980
          %v982 = vlaneseq
          %v983 = vshrl.u32 %v982, 7
          %v984 = vsub.s32 %v981, %v983
          %v985 = vrot.slane %v963, %v984
          %v987 = vunpack.c.l.s4 1966171168
          %v988 = vunpack.c.0.s8 %v987
          %v989 = vlaneseq
          %v990 = vshrl.u32 %v989, 7
          %v991 = vsub.s32 %v988, %v990
          %v992 = vrot.slane %v964, %v991
          %v993 = vcombine.high %v971, %v971
          %v994 = vcombine.high %v978, %v978
          %v995 = vcombine.high %v985, %v985
          %v996 = vcombine.high %v992, %v992
          %v997 = vcombine.high %v568, %v568
          %v999 = vunpack.c.l.s4 1966171168
          %v1000 = vunpack.c.0.s8 %v999
          %v1001 = vlaneseq
          %v1002 = vshrl.u32 %v1001, 7
          %v1003 = vsub.s32 %v1000, %v1002
          %v1004 = vrot.slane %v568, %v1003
          %v1006 = vunpack.c.l.s4 1966171168
          %v1007 = vunpack.c.0.s8 %v1006
          %v1008 = vlaneseq
          %v1009 = vshrl.u32 %v1008, 7
          %v1010 = vsub.s32 %v1007, %v1009
          %v1011 = vrot.slane %v997, %v1010
          %v1012 = vcombine.high %v1004, %v1004
          %v1013 = vcombine.high %v1011, %v1011
          %v1015 = vunpack.c.l.s4 1966171168
          %v1016 = vunpack.c.0.s8 %v1015
          %v1017 = vlaneseq
          %v1018 = vshrl.u32 %v1017, 7
          %v1019 = vsub.s32 %v1016, %v1018
          %v1020 = vrot.slane %v1004, %v1019
          %v1022 = vunpack.c.l.s4 1966171168
          %v1023 = vunpack.c.0.s8 %v1022
          %v1024 = vlaneseq
          %v1025 = vshrl.u32 %v1024, 7
          %v1026 = vsub.s32 %v1023, %v1025
          %v1027 = vrot.slane %v1011, %v1026
          %v1029 = vunpack.c.l.s4 1966171168
          %v1030 = vunpack.c.0.s8 %v1029
          %v1031 = vlaneseq
          %v1032 = vshrl.u32 %v1031, 7
          %v1033 = vsub.s32 %v1030, %v1032
          %v1034 = vrot.slane %v1012, %v1033
          %v1036 = vunpack.c.l.s4 1966171168
          %v1037 = vunpack.c.0.s8 %v1036
          %v1038 = vlaneseq
          %v1039 = vshrl.u32 %v1038, 7
          %v1040 = vsub.s32 %v1037, %v1039
          %v1041 = vrot.slane %v1013, %v1040
          %v1042 = vcombine.high %v1020, %v1020
          %v1043 = vcombine.high %v1027, %v1027
          %v1044 = vcombine.high %v1034, %v1034
          %v1045 = vcombine.high %v1041, %v1041
          %v1046 = vcombine.high %v569, %v569
          %v1048 = vunpack.c.l.s4 1966171168
          %v1049 = vunpack.c.0.s8 %v1048
          %v1050 = vlaneseq
          %v1051 = vshrl.u32 %v1050, 7
          %v1052 = vsub.s32 %v1049, %v1051
          %v1053 = vrot.slane %v569, %v1052
          %v1055 = vunpack.c.l.s4 1966171168
          %v1056 = vunpack.c.0.s8 %v1055
          %v1057 = vlaneseq
          %v1058 = vshrl.u32 %v1057, 7
          %v1059 = vsub.s32 %v1056, %v1058
          %v1060 = vrot.slane %v1046, %v1059
          %v1061 = vcombine.high %v1053, %v1053
          %v1062 = vcombine.high %v1060, %v1060
          %v1064 = vunpack.c.l.s4 1966171168
          %v1065 = vunpack.c.0.s8 %v1064
          %v1066 = vlaneseq
          %v1067 = vshrl.u32 %v1066, 7
          %v1068 = vsub.s32 %v1065, %v1067
          %v1069 = vrot.slane %v1053, %v1068
          %v1071 = vunpack.c.l.s4 1966171168
          %v1072 = vunpack.c.0.s8 %v1071
          %v1073 = vlaneseq
          %v1074 = vshrl.u32 %v1073, 7
          %v1075 = vsub.s32 %v1072, %v1074
          %v1076 = vrot.slane %v1060, %v1075
          %v1078 = vunpack.c.l.s4 1966171168
          %v1079 = vunpack.c.0.s8 %v1078
          %v1080 = vlaneseq
          %v1081 = vshrl.u32 %v1080, 7
          %v1082 = vsub.s32 %v1079, %v1081
          %v1083 = vrot.slane %v1061, %v1082
          %v1085 = vunpack.c.l.s4 1966171168
          %v1086 = vunpack.c.0.s8 %v1085
          %v1087 = vlaneseq
          %v1088 = vshrl.u32 %v1087, 7
          %v1089 = vsub.s32 %v1086, %v1088
          %v1090 = vrot.slane %v1062, %v1089
          %v1091 = vcombine.high %v1069, %v1069
          %v1092 = vcombine.high %v1076, %v1076
          %v1093 = vcombine.high %v1083, %v1083
          %v1094 = vcombine.high %v1090, %v1090
          %v1095 = vcombine.high %v570, %v570
          %v1097 = vunpack.c.l.s4 1966171168
          %v1098 = vunpack.c.0.s8 %v1097
          %v1099 = vlaneseq
          %v1100 = vshrl.u32 %v1099, 7
          %v1101 = vsub.s32 %v1098, %v1100
          %v1102 = vrot.slane %v570, %v1101
          %v1104 = vunpack.c.l.s4 1966171168
          %v1105 = vunpack.c.0.s8 %v1104
          %v1106 = vlaneseq
          %v1107 = vshrl.u32 %v1106, 7
          %v1108 = vsub.s32 %v1105, %v1107
          %v1109 = vrot.slane %v1095, %v1108
          %v1110 = vcombine.high %v1102, %v1102
          %v1111 = vcombine.high %v1109, %v1109
          %v1113 = vunpack.c.l.s4 1966171168
          %v1114 = vunpack.c.0.s8 %v1113
          %v1115 = vlaneseq
          %v1116 = vshrl.u32 %v1115, 7
          %v1117 = vsub.s32 %v1114, %v1116
          %v1118 = vrot.slane %v1102, %v1117
          %v1120 = vunpack.c.l.s4 1966171168
          %v1121 = vunpack.c.0.s8 %v1120
          %v1122 = vlaneseq
          %v1123 = vshrl.u32 %v1122, 7
          %v1124 = vsub.s32 %v1121, %v1123
          %v1125 = vrot.slane %v1109, %v1124
          %v1127 = vunpack.c.l.s4 1966171168
          %v1128 = vunpack.c.0.s8 %v1127
          %v1129 = vlaneseq
          %v1130 = vshrl.u32 %v1129, 7
          %v1131 = vsub.s32 %v1128, %v1130
          %v1132 = vrot.slane %v1110, %v1131
          %v1134 = vunpack.c.l.s4 1966171168
          %v1135 = vunpack.c.0.s8 %v1134
          %v1136 = vlaneseq
          %v1137 = vshrl.u32 %v1136, 7
          %v1138 = vsub.s32 %v1135, %v1137
          %v1139 = vrot.slane %v1111, %v1138
          %v1140 = vcombine.high %v1118, %v1118
          %v1141 = vcombine.high %v1125, %v1125
          %v1142 = vcombine.high %v1132, %v1132
          %v1143 = vcombine.high %v1139, %v1139
          %v1144 = vcombine.high %v571, %v571
          %v1146 = vunpack.c.l.s4 1966171168
          %v1147 = vunpack.c.0.s8 %v1146
          %v1148 = vlaneseq
          %v1149 = vshrl.u32 %v1148, 7
          %v1150 = vsub.s32 %v1147, %v1149
          %v1151 = vrot.slane %v571, %v1150
          %v1153 = vunpack.c.l.s4 1966171168
          %v1154 = vunpack.c.0.s8 %v1153
          %v1155 = vlaneseq
          %v1156 = vshrl.u32 %v1155, 7
          %v1157 = vsub.s32 %v1154, %v1156
          %v1158 = vrot.slane %v1144, %v1157
          %v1159 = vcombine.high %v1151, %v1151
          %v1160 = vcombine.high %v1158, %v1158
          %v1162 = vunpack.c.l.s4 1966171168
          %v1163 = vunpack.c.0.s8 %v1162
          %v1164 = vlaneseq
          %v1165 = vshrl.u32 %v1164, 7
          %v1166 = vsub.s32 %v1163, %v1165
          %v1167 = vrot.slane %v1151, %v1166
          %v1169 = vunpack.c.l.s4 1966171168
          %v1170 = vunpack.c.0.s8 %v1169
          %v1171 = vlaneseq
          %v1172 = vshrl.u32 %v1171, 7
          %v1173 = vsub.s32 %v1170, %v1172
          %v1174 = vrot.slane %v1158, %v1173
          %v1176 = vunpack.c.l.s4 1966171168
          %v1177 = vunpack.c.0.s8 %v1176
          %v1178 = vlaneseq
          %v1179 = vshrl.u32 %v1178, 7
          %v1180 = vsub.s32 %v1177, %v1179
          %v1181 = vrot.slane %v1159, %v1180
          %v1183 = vunpack.c.l.s4 1966171168
          %v1184 = vunpack.c.0.s8 %v1183
          %v1185 = vlaneseq
          %v1186 = vshrl.u32 %v1185, 7
          %v1187 = vsub.s32 %v1184, %v1186
          %v1188 = vrot.slane %v1160, %v1187
          %v1189 = vcombine.high %v1167, %v1167
          %v1190 = vcombine.high %v1174, %v1174
          %v1191 = vcombine.high %v1181, %v1181
          %v1192 = vcombine.high %v1188, %v1188
          %v1193 = vcombine.high %v572, %v572
          %v1195 = vunpack.c.l.s4 1966171168
          %v1196 = vunpack.c.0.s8 %v1195
          %v1197 = vlaneseq
          %v1198 = vshrl.u32 %v1197, 7
          %v1199 = vsub.s32 %v1196, %v1198
          %v1200 = vrot.slane %v572, %v1199
          %v1202 = vunpack.c.l.s4 1966171168
          %v1203 = vunpack.c.0.s8 %v1202
          %v1204 = vlaneseq
          %v1205 = vshrl.u32 %v1204, 7
          %v1206 = vsub.s32 %v1203, %v1205
          %v1207 = vrot.slane %v1193, %v1206
          %v1208 = vcombine.high %v1200, %v1200
          %v1209 = vcombine.high %v1207, %v1207
          %v1211 = vunpack.c.l.s4 1966171168
          %v1212 = vunpack.c.0.s8 %v1211
          %v1213 = vlaneseq
          %v1214 = vshrl.u32 %v1213, 7
          %v1215 = vsub.s32 %v1212, %v1214
          %v1216 = vrot.slane %v1200, %v1215
          %v1218 = vunpack.c.l.s4 1966171168
          %v1219 = vunpack.c.0.s8 %v1218
          %v1220 = vlaneseq
          %v1221 = vshrl.u32 %v1220, 7
          %v1222 = vsub.s32 %v1219, %v1221
          %v1223 = vrot.slane %v1207, %v1222
          %v1225 = vunpack.c.l.s4 1966171168
          %v1226 = vunpack.c.0.s8 %v1225
          %v1227 = vlaneseq
          %v1228 = vshrl.u32 %v1227, 7
          %v1229 = vsub.s32 %v1226, %v1228
          %v1230 = vrot.slane %v1208, %v1229
          %v1232 = vunpack.c.l.s4 1966171168
          %v1233 = vunpack.c.0.s8 %v1232
          %v1234 = vlaneseq
          %v1235 = vshrl.u32 %v1234, 7
          %v1236 = vsub.s32 %v1233, %v1235
          %v1237 = vrot.slane %v1209, %v1236
          %v1238 = vcombine.high %v1216, %v1216
          %v1239 = vcombine.high %v1223, %v1223
          %v1240 = vcombine.high %v1230, %v1230
          %v1241 = vcombine.high %v1237, %v1237
          %v1242 = vcombine.high %v573, %v573
          %v1244 = vunpack.c.l.s4 1966171168
          %v1245 = vunpack.c.0.s8 %v1244
          %v1246 = vlaneseq
          %v1247 = vshrl.u32 %v1246, 7
          %v1248 = vsub.s32 %v1245, %v1247
          %v1249 = vrot.slane %v573, %v1248
          %v1251 = vunpack.c.l.s4 1966171168
          %v1252 = vunpack.c.0.s8 %v1251
          %v1253 = vlaneseq
          %v1254 = vshrl.u32 %v1253, 7
          %v1255 = vsub.s32 %v1252, %v1254
          %v1256 = vrot.slane %v1242, %v1255
          %v1257 = vcombine.high %v1249, %v1249
          %v1258 = vcombine.high %v1256, %v1256
          %v1260 = vunpack.c.l.s4 1966171168
          %v1261 = vunpack.c.0.s8 %v1260
          %v1262 = vlaneseq
          %v1263 = vshrl.u32 %v1262, 7
          %v1264 = vsub.s32 %v1261, %v1263
          %v1265 = vrot.slane %v1249, %v1264
          %v1267 = vunpack.c.l.s4 1966171168
          %v1268 = vunpack.c.0.s8 %v1267
          %v1269 = vlaneseq
          %v1270 = vshrl.u32 %v1269, 7
          %v1271 = vsub.s32 %v1268, %v1270
          %v1272 = vrot.slane %v1256, %v1271
          %v1274 = vunpack.c.l.s4 1966171168
          %v1275 = vunpack.c.0.s8 %v1274
          %v1276 = vlaneseq
          %v1277 = vshrl.u32 %v1276, 7
          %v1278 = vsub.s32 %v1275, %v1277
          %v1279 = vrot.slane %v1257, %v1278
          %v1281 = vunpack.c.l.s4 1966171168
          %v1282 = vunpack.c.0.s8 %v1281
          %v1283 = vlaneseq
          %v1284 = vshrl.u32 %v1283, 7
          %v1285 = vsub.s32 %v1282, %v1284
          %v1286 = vrot.slane %v1258, %v1285
          %v1287 = vcombine.high %v1265, %v1265
          %v1288 = vcombine.high %v1272, %v1272
          %v1289 = vcombine.high %v1279, %v1279
          %v1290 = vcombine.high %v1286, %v1286
          %v1291 = vcombine.high %v574, %v574
          %v1293 = vunpack.c.l.s4 1966171168
          %v1294 = vunpack.c.0.s8 %v1293
          %v1295 = vlaneseq
          %v1296 = vshrl.u32 %v1295, 7
          %v1297 = vsub.s32 %v1294, %v1296
          %v1298 = vrot.slane %v574, %v1297
          %v1300 = vunpack.c.l.s4 1966171168
          %v1301 = vunpack.c.0.s8 %v1300
          %v1302 = vlaneseq
          %v1303 = vshrl.u32 %v1302, 7
          %v1304 = vsub.s32 %v1301, %v1303
          %v1305 = vrot.slane %v1291, %v1304
          %v1306 = vcombine.high %v1298, %v1298
          %v1307 = vcombine.high %v1305, %v1305
          %v1309 = vunpack.c.l.s4 1966171168
          %v1310 = vunpack.c.0.s8 %v1309
          %v1311 = vlaneseq
          %v1312 = vshrl.u32 %v1311, 7
          %v1313 = vsub.s32 %v1310, %v1312
          %v1314 = vrot.slane %v1298, %v1313
          %v1316 = vunpack.c.l.s4 1966171168
          %v1317 = vunpack.c.0.s8 %v1316
          %v1318 = vlaneseq
          %v1319 = vshrl.u32 %v1318, 7
          %v1320 = vsub.s32 %v1317, %v1319
          %v1321 = vrot.slane %v1305, %v1320
          %v1323 = vunpack.c.l.s4 1966171168
          %v1324 = vunpack.c.0.s8 %v1323
          %v1325 = vlaneseq
          %v1326 = vshrl.u32 %v1325, 7
          %v1327 = vsub.s32 %v1324, %v1326
          %v1328 = vrot.slane %v1306, %v1327
          %v1330 = vunpack.c.l.s4 1966171168
          %v1331 = vunpack.c.0.s8 %v1330
          %v1332 = vlaneseq
          %v1333 = vshrl.u32 %v1332, 7
          %v1334 = vsub.s32 %v1331, %v1333
          %v1335 = vrot.slane %v1307, %v1334
          %v1336 = vcombine.high %v1314, %v1314
          %v1337 = vcombine.high %v1321, %v1321
          %v1338 = vcombine.high %v1328, %v1328
          %v1339 = vcombine.high %v1335, %v1335
          %v1340 = vcombine.high %v575, %v575
          %v1342 = vunpack.c.l.s4 1966171168
          %v1343 = vunpack.c.0.s8 %v1342
          %v1344 = vlaneseq
          %v1345 = vshrl.u32 %v1344, 7
          %v1346 = vsub.s32 %v1343, %v1345
          %v1347 = vrot.slane %v575, %v1346
          %v1349 = vunpack.c.l.s4 1966171168
          %v1350 = vunpack.c.0.s8 %v1349
          %v1351 = vlaneseq
          %v1352 = vshrl.u32 %v1351, 7
          %v1353 = vsub.s32 %v1350, %v1352
          %v1354 = vrot.slane %v1340, %v1353
          %v1355 = vcombine.high %v1347, %v1347
          %v1356 = vcombine.high %v1354, %v1354
          %v1358 = vunpack.c.l.s4 1966171168
          %v1359 = vunpack.c.0.s8 %v1358
          %v1360 = vlaneseq
          %v1361 = vshrl.u32 %v1360, 7
          %v1362 = vsub.s32 %v1359, %v1361
          %v1363 = vrot.slane %v1347, %v1362
          %v1365 = vunpack.c.l.s4 1966171168
          %v1366 = vunpack.c.0.s8 %v1365
          %v1367 = vlaneseq
          %v1368 = vshrl.u32 %v1367, 7
          %v1369 = vsub.s32 %v1366, %v1368
          %v1370 = vrot.slane %v1354, %v1369
          %v1372 = vunpack.c.l.s4 1966171168
          %v1373 = vunpack.c.0.s8 %v1372
          %v1374 = vlaneseq
          %v1375 = vshrl.u32 %v1374, 7
          %v1376 = vsub.s32 %v1373, %v1375
          %v1377 = vrot.slane %v1355, %v1376
          %v1379 = vunpack.c.l.s4 1966171168
          %v1380 = vunpack.c.0.s8 %v1379
          %v1381 = vlaneseq
          %v1382 = vshrl.u32 %v1381, 7
          %v1383 = vsub.s32 %v1380, %v1382
          %v1384 = vrot.slane %v1356, %v1383
          %v1385 = vcombine.high %v1363, %v1363
          %v1386 = vcombine.high %v1370, %v1370
          %v1387 = vcombine.high %v1377, %v1377
          %v1388 = vcombine.high %v1384, %v1384
          %vm1517 = vcmask 1040384
          %v1518 = vsel %vm1517, %v628, 0.0
          %v1519 = vsel %vm1517, %v677, 0.0
          %v1520 = vadd.f32 %v1518, %v1519
          %v1521 = vsel %vm1517, %v726, 0.0
          %v1522 = vadd.f32 %v1520, %v1521
          %v1523 = vsel %vm1517, %v775, 0.0
          %v1524 = vadd.f32 %v1522, %v1523
          %v1525 = vsel %vm1517, %v824, 0.0
          %v1526 = vadd.f32 %v1524, %v1525
          %v1527 = vsel %vm1517, %v873, 0.0
          %v1528 = vadd.f32 %v1526, %v1527
          %v1529 = vsel %vm1517, %v922, 0.0
          %v1530 = vadd.f32 %v1528, %v1529
          %v1531 = vsel %vm1517, %v971, 0.0
          %v1532 = vadd.f32 %v1530, %v1531
          %v1533 = vsel %vm1517, %v1020, 0.0
          %v1534 = vadd.f32 %v1532, %v1533
          %v1535 = vsel %vm1517, %v1069, 0.0
          %v1536 = vadd.f32 %v1534, %v1535
          %v1537 = vsel %vm1517, %v1118, 0.0
          %v1538 = vadd.f32 %v1536, %v1537
          %v1539 = vsel %vm1517, %v1167, 0.0
          %v1540 = vadd.f32 %v1538, %v1539
          %v1541 = vsel %vm1517, %v1216, 0.0
          %v1542 = vadd.f32 %v1540, %v1541
          %v1543 = vsel %vm1517, %v1265, 0.0
          %v1544 = vadd.f32 %v1542, %v1543
          %v1545 = vsel %vm1517, %v1314, 0.0
          %v1546 = vadd.f32 %v1544, %v1545
          %v1547 = vsel %vm1517, %v1363, 0.0
          %v1548 = vadd.f32 %v1546, %v1547
          %v1549 = vrot.slane %v1548, 4
          %v1550 = vadd.f32 %v1548, %v1549
          %v1551 = vrot.slane %v1550, 2
          %v1552 = vadd.f32 %v1550, %v1551
          %v1553 = vrot.slane %v1552, 1
          %v1554 = vadd.f32 %v1552, %v1553
          %v1555 = vsel %vm1517, %v642, 0.0
          %v1556 = vsel %vm1517, %v691, 0.0
          %v1557 = vadd.f32 %v1555, %v1556
          %v1558 = vsel %vm1517, %v740, 0.0
          %v1559 = vadd.f32 %v1557, %v1558
          %v1560 = vsel %vm1517, %v789, 0.0
          %v1561 = vadd.f32 %v1559, %v1560
          %v1562 = vsel %vm1517, %v838, 0.0
          %v1563 = vadd.f32 %v1561, %v1562
          %v1564 = vsel %vm1517, %v887, 0.0
          %v1565 = vadd.f32 %v1563, %v1564
          %v1566 = vsel %vm1517, %v936, 0.0
          %v1567 = vadd.f32 %v1565, %v1566
          %v1568 = vsel %vm1517, %v985, 0.0
          %v1569 = vadd.f32 %v1567, %v1568
          %v1570 = vsel %vm1517, %v1034, 0.0
          %v1571 = vadd.f32 %v1569, %v1570
          %v1572 = vsel %vm1517, %v1083, 0.0
          %v1573 = vadd.f32 %v1571, %v1572
          %v1574 = vsel %vm1517, %v1132, 0.0
          %v1575 = vadd.f32 %v1573, %v1574
          %v1576 = vsel %vm1517, %v1181, 0.0
          %v1577 = vadd.f32 %v1575, %v1576
          %v1578 = vsel %vm1517, %v1230, 0.0
          %v1579 = vadd.f32 %v1577, %v1578
          %v1580 = vsel %vm1517, %v1279, 0.0
          %v1581 = vadd.f32 %v1579, %v1580
          %v1582 = vsel %vm1517, %v1328, 0.0
          %v1583 = vadd.f32 %v1581, %v1582
          %v1584 = vsel %vm1517, %v1377, 0.0
          %v1585 = vadd.f32 %v1583, %v1584
          %v1586 = vrot.slane %v1585, 4
          %v1587 = vadd.f32 %v1585, %v1586
          %v1588 = vrot.slane %v1587, 2
          %v1589 = vadd.f32 %v1587, %v1588
          %v1590 = vrot.slane %v1589, 1
          %v1591 = vadd.f32 %v1589, %v1590
          %v1592 = vsel %vm1517, %v650, 0.0
          %v1593 = vsel %vm1517, %v699, 0.0
          %v1594 = vadd.f32 %v1592, %v1593
          %v1595 = vsel %vm1517, %v748, 0.0
          %v1596 = vadd.f32 %v1594, %v1595
          %v1597 = vsel %vm1517, %v797, 0.0
          %v1598 = vadd.f32 %v1596, %v1597
          %v1599 = vsel %vm1517, %v846, 0.0
          %v1600 = vadd.f32 %v1598, %v1599
          %v1601 = vsel %vm1517, %v895, 0.0
          %v1602 = vadd.f32 %v1600, %v1601
          %v1603 = vsel %vm1517, %v944, 0.0
          %v1604 = vadd.f32 %v1602, %v1603
          %v1605 = vsel %vm1517, %v993, 0.0
          %v1606 = vadd.f32 %v1604, %v1605
          %v1607 = vsel %vm1517, %v1042, 0.0
          %v1608 = vadd.f32 %v1606, %v1607
          %v1609 = vsel %vm1517, %v1091, 0.0
          %v1610 = vadd.f32 %v1608, %v1609
          %v1611 = vsel %vm1517, %v1140, 0.0
          %v1612 = vadd.f32 %v1610, %v1611
          %v1613 = vsel %vm1517, %v1189, 0.0
          %v1614 = vadd.f32 %v1612, %v1613
          %v1615 = vsel %vm1517, %v1238, 0.0
          %v1616 = vadd.f32 %v1614, %v1615
          %v1617 = vsel %vm1517, %v1287, 0.0
          %v1618 = vadd.f32 %v1616, %v1617
          %v1619 = vsel %vm1517, %v1336, 0.0
          %v1620 = vadd.f32 %v1618, %v1619
          %v1621 = vsel %vm1517, %v1385, 0.0
          %v1622 = vadd.f32 %v1620, %v1621
          %v1623 = vrot.slane %v1622, 4
          %v1624 = vadd.f32 %v1622, %v1623
          %v1625 = vrot.slane %v1624, 2
          %v1626 = vadd.f32 %v1624, %v1625
          %v1627 = vrot.slane %v1626, 1
          %v1628 = vadd.f32 %v1626, %v1627
          %v1629 = vsel %vm1517, %v652, 0.0
          %v1630 = vsel %vm1517, %v701, 0.0
          %v1631 = vadd.f32 %v1629, %v1630
          %v1632 = vsel %vm1517, %v750, 0.0
          %v1633 = vadd.f32 %v1631, %v1632
          %v1634 = vsel %vm1517, %v799, 0.0
          %v1635 = vadd.f32 %v1633, %v1634
          %v1636 = vsel %vm1517, %v848, 0.0
          %v1637 = vadd.f32 %v1635, %v1636
          %v1638 = vsel %vm1517, %v897, 0.0
          %v1639 = vadd.f32 %v1637, %v1638
          %v1640 = vsel %vm1517, %v946, 0.0
          %v1641 = vadd.f32 %v1639, %v1640
          %v1642 = vsel %vm1517, %v995, 0.0
          %v1643 = vadd.f32 %v1641, %v1642
          %v1644 = vsel %vm1517, %v1044, 0.0
          %v1645 = vadd.f32 %v1643, %v1644
          %v1646 = vsel %vm1517, %v1093, 0.0
          %v1647 = vadd.f32 %v1645, %v1646
          %v1648 = vsel %vm1517, %v1142, 0.0
          %v1649 = vadd.f32 %v1647, %v1648
          %v1650 = vsel %vm1517, %v1191, 0.0
          %v1651 = vadd.f32 %v1649, %v1650
          %v1652 = vsel %vm1517, %v1240, 0.0
          %v1653 = vadd.f32 %v1651, %v1652
          %v1654 = vsel %vm1517, %v1289, 0.0
          %v1655 = vadd.f32 %v1653, %v1654
          %v1656 = vsel %vm1517, %v1338, 0.0
          %v1657 = vadd.f32 %v1655, %v1656
          %v1658 = vsel %vm1517, %v1387, 0.0
          %v1659 = vadd.f32 %v1657, %v1658
          %v1660 = vrot.slane %v1659, 4
          %v1661 = vadd.f32 %v1659, %v1660
          %v1662 = vrot.slane %v1661, 2
          %v1663 = vadd.f32 %v1661, %v1662
          %v1664 = vrot.slane %v1663, 1
          %v1665 = vadd.f32 %v1663, %v1664
          %v1666 = vsel %vm1517, %v635, 0.0
          %v1667 = vsel %vm1517, %v684, 0.0
          %v1668 = vadd.f32 %v1666, %v1667
          %v1669 = vsel %vm1517, %v733, 0.0
          %v1670 = vadd.f32 %v1668, %v1669
          %v1671 = vsel %vm1517, %v782, 0.0
          %v1672 = vadd.f32 %v1670, %v1671
          %v1673 = vsel %vm1517, %v831, 0.0
          %v1674 = vadd.f32 %v1672, %v1673
          %v1675 = vsel %vm1517, %v880, 0.0
          %v1676 = vadd.f32 %v1674, %v1675
          %v1677 = vsel %vm1517, %v929, 0.0
          %v1678 = vadd.f32 %v1676, %v1677
          %v1679 = vsel %vm1517, %v978, 0.0
          %v1680 = vadd.f32 %v1678, %v1679
          %v1681 = vsel %vm1517, %v1027, 0.0
          %v1682 = vadd.f32 %v1680, %v1681
          %v1683 = vsel %vm1517, %v1076, 0.0
          %v1684 = vadd.f32 %v1682, %v1683
          %v1685 = vsel %vm1517, %v1125, 0.0
          %v1686 = vadd.f32 %v1684, %v1685
          %v1687 = vsel %vm1517, %v1174, 0.0
          %v1688 = vadd.f32 %v1686, %v1687
          %v1689 = vsel %vm1517, %v1223, 0.0
          %v1690 = vadd.f32 %v1688, %v1689
          %v1691 = vsel %vm1517, %v1272, 0.0
          %v1692 = vadd.f32 %v1690, %v1691
          %v1693 = vsel %vm1517, %v1321, 0.0
          %v1694 = vadd.f32 %v1692, %v1693
          %v1695 = vsel %vm1517, %v1370, 0.0
          %v1696 = vadd.f32 %v1694, %v1695
          %v1697 = vrot.slane %v1696, 4
          %v1698 = vadd.f32 %v1696, %v1697
          %v1699 = vrot.slane %v1698, 2
          %v1700 = vadd.f32 %v1698, %v1699
          %v1701 = vrot.slane %v1700, 1
          %v1702 = vadd.f32 %v1700, %v1701
          %v1703 = vsel %vm1517, %v649, 0.0
          %v1704 = vsel %vm1517, %v698, 0.0
          %v1705 = vadd.f32 %v1703, %v1704
          %v1706 = vsel %vm1517, %v747, 0.0
          %v1707 = vadd.f32 %v1705, %v1706
          %v1708 = vsel %vm1517, %v796, 0.0
          %v1709 = vadd.f32 %v1707, %v1708
          %v1710 = vsel %vm1517, %v845, 0.0
          %v1711 = vadd.f32 %v1709, %v1710
          %v1712 = vsel %vm1517, %v894, 0.0
          %v1713 = vadd.f32 %v1711, %v1712
          %v1714 = vsel %vm1517, %v943, 0.0
          %v1715 = vadd.f32 %v1713, %v1714
          %v1716 = vsel %vm1517, %v992, 0.0
          %v1717 = vadd.f32 %v1715, %v1716
          %v1718 = vsel %vm1517, %v1041, 0.0
          %v1719 = vadd.f32 %v1717, %v1718
          %v1720 = vsel %vm1517, %v1090, 0.0
          %v1721 = vadd.f32 %v1719, %v1720
          %v1722 = vsel %vm1517, %v1139, 0.0
          %v1723 = vadd.f32 %v1721, %v1722
          %v1724 = vsel %vm1517, %v1188, 0.0
          %v1725 = vadd.f32 %v1723, %v1724
          %v1726 = vsel %vm1517, %v1237, 0.0
          %v1727 = vadd.f32 %v1725, %v1726
          %v1728 = vsel %vm1517, %v1286, 0.0
          %v1729 = vadd.f32 %v1727, %v1728
          %v1730 = vsel %vm1517, %v1335, 0.0
          %v1731 = vadd.f32 %v1729, %v1730
          %v1732 = vsel %vm1517, %v1384, 0.0
          %v1733 = vadd.f32 %v1731, %v1732
          %v1734 = vrot.slane %v1733, 4
          %v1735 = vadd.f32 %v1733, %v1734
          %v1736 = vrot.slane %v1735, 2
          %v1737 = vadd.f32 %v1735, %v1736
          %v1738 = vrot.slane %v1737, 1
          %v1739 = vadd.f32 %v1737, %v1738
          %v1740 = vsel %vm1517, %v651, 0.0
          %v1741 = vsel %vm1517, %v700, 0.0
          %v1742 = vadd.f32 %v1740, %v1741
          %v1743 = vsel %vm1517, %v749, 0.0
          %v1744 = vadd.f32 %v1742, %v1743
          %v1745 = vsel %vm1517, %v798, 0.0
          %v1746 = vadd.f32 %v1744, %v1745
          %v1747 = vsel %vm1517, %v847, 0.0
          %v1748 = vadd.f32 %v1746, %v1747
          %v1749 = vsel %vm1517, %v896, 0.0
          %v1750 = vadd.f32 %v1748, %v1749
          %v1751 = vsel %vm1517, %v945, 0.0
          %v1752 = vadd.f32 %v1750, %v1751
          %v1753 = vsel %vm1517, %v994, 0.0
          %v1754 = vadd.f32 %v1752, %v1753
          %v1755 = vsel %vm1517, %v1043, 0.0
          %v1756 = vadd.f32 %v1754, %v1755
          %v1757 = vsel %vm1517, %v1092, 0.0
          %v1758 = vadd.f32 %v1756, %v1757
          %v1759 = vsel %vm1517, %v1141, 0.0
          %v1760 = vadd.f32 %v1758, %v1759
          %v1761 = vsel %vm1517, %v1190, 0.0
          %v1762 = vadd.f32 %v1760, %v1761
          %v1763 = vsel %vm1517, %v1239, 0.0
          %v1764 = vadd.f32 %v1762, %v1763
          %v1765 = vsel %vm1517, %v1288, 0.0
          %v1766 = vadd.f32 %v1764, %v1765
          %v1767 = vsel %vm1517, %v1337, 0.0
          %v1768 = vadd.f32 %v1766, %v1767
          %v1769 = vsel %vm1517, %v1386, 0.0
          %v1770 = vadd.f32 %v1768, %v1769
          %v1771 = vrot.slane %v1770, 4
          %v1772 = vadd.f32 %v1770, %v1771
          %v1773 = vrot.slane %v1772, 2
          %v1774 = vadd.f32 %v1772, %v1773
          %v1775 = vrot.slane %v1774, 1
          %v1776 = vadd.f32 %v1774, %v1775
          %v1777 = vsel %vm1517, %v653, 0.0
          %v1778 = vsel %vm1517, %v702, 0.0
          %v1779 = vadd.f32 %v1777, %v1778
          %v1780 = vsel %vm1517, %v751, 0.0
          %v1781 = vadd.f32 %v1779, %v1780
          %v1782 = vsel %vm1517, %v800, 0.0
          %v1783 = vadd.f32 %v1781, %v1782
          %v1784 = vsel %vm1517, %v849, 0.0
          %v1785 = vadd.f32 %v1783, %v1784
          %v1786 = vsel %vm1517, %v898, 0.0
          %v1787 = vadd.f32 %v1785, %v1786
          %v1788 = vsel %vm1517, %v947, 0.0
          %v1789 = vadd.f32 %v1787, %v1788
          %v1790 = vsel %vm1517, %v996, 0.0
          %v1791 = vadd.f32 %v1789, %v1790
          %v1792 = vsel %vm1517, %v1045, 0.0
          %v1793 = vadd.f32 %v1791, %v1792
          %v1794 = vsel %vm1517, %v1094, 0.0
          %v1795 = vadd.f32 %v1793, %v1794
          %v1796 = vsel %vm1517, %v1143, 0.0
          %v1797 = vadd.f32 %v1795, %v1796
          %v1798 = vsel %vm1517, %v1192, 0.0
          %v1799 = vadd.f32 %v1797, %v1798
          %v1800 = vsel %vm1517, %v1241, 0.0
          %v1801 = vadd.f32 %v1799, %v1800
          %v1802 = vsel %vm1517, %v1290, 0.0
          %v1803 = vadd.f32 %v1801, %v1802
          %v1804 = vsel %vm1517, %v1339, 0.0
          %v1805 = vadd.f32 %v1803, %v1804
          %v1806 = vsel %vm1517, %v1388, 0.0
          %v1807 = vadd.f32 %v1805, %v1806
          %v1808 = vrot.slane %v1807, 4
          %v1809 = vadd.f32 %v1807, %v1808
          %v1810 = vrot.slane %v1809, 2
          %v1811 = vadd.f32 %v1809, %v1810
          %v1812 = vrot.slane %v1811, 1
          %v1813 = vadd.f32 %v1811, %v1812
          %v1814 = vld [vmem:[%s212] sm:$0xff]
          %v1815 = vstv %s588
          %v1816 = vmul.f32 %v1815, %v1554
          %v1817 = vmul.f32 %v1815, %v1591
          %v1818 = vmul.f32 %v1815, %v1628
          %v1819 = vmul.f32 %v1815, %v1665
          %v1820 = vmul.f32 %v1815, %v1702
          %v1821 = vmul.f32 %v1815, %v1739
          %v1822 = vmul.f32 %v1815, %v1776
          %v1823 = vmul.f32 %v1815, %v1813
          %vm1832 = vcmask 1041409
          %v1833 = vsel %vm1832, %v1817, %v1816
          %vm1834 = vcmask 1042434
          %v1835 = vsel %vm1834, %v1818, %v1833
          %vm1836 = vcmask 1043459
          %v1837 = vsel %vm1836, %v1819, %v1835
          %vm1838 = vcmask 1044484
          %v1839 = vsel %vm1838, %v1820, %v1837
          %vm1840 = vcmask 1045509
          %v1841 = vsel %vm1840, %v1821, %v1839
          %vm1842 = vcmask 1046534
          %v1843 = vsel %vm1842, %v1822, %v1841
          %vm1844 = vcmask 1047559
          %v1845 = vsel %vm1844, %v1823, %v1843
          %v1847 = vadd.f32 %v1814, %v1845
          %1848 = vst [vmem:[%s212] sm:$0xff] %v1847
        $region44: #{tpu_custom_call.1} parent=27 // pred_fallthru
          _
        %s1849 = sand.u32 %s94, 1
        %s1850 = scalar_lea.sflag [#allocation4], %s1849
        %s1851 = sand.u32 %s94, 1
        %s1852 = smul.addr %s1851, 8
        %s1853 = scalar_lea.vmem [#allocation7], %s1852
        // Predicated region
        $region45: #{tpu_custom_call.1} parent=27 // pred_check
          %p1854 = pneg %p104
        $region46: #{tpu_custom_call.1} parent=27 // pred_check_branch
          %1856 = sbr.rel (%p1854) target = $region48
        $region47: #{tpu_custom_call.1} parent=27 // pred_region
          %s1858 = ssub.s32 128, 128
          %1859 = vsyncadd %s1850, %s1858
          %s1860 = smul.addr %s26, 128
          %s1861 = scalar_lea.hbm %s2, %s1860
          %s1863 = sshll.u32 %s1853, 4
          %s1864 = int_to_ptr.vmem [resolvable:$true] %s1863
          %1866 = dma.vmem_to_hbm [thread:$0]  %s1864, 128, %s1861, %s1850
        $region48: #{tpu_custom_call.1} parent=27 // pred_fallthru
          _
      $region28: #{tpu_custom_call.1} parent=5 // pred_fallthru
        _
      %p1867 = scmp.le.s32.totalorder 2, %s17
      // Predicated region
      $region49: #{tpu_custom_call.1} parent=5 // pred_check
        %p1868 = pneg %p1867
      $region50: #{tpu_custom_call.1} parent=5 // pred_check_branch
        %1870 = sbr.rel (%p1868) target = $region52
      $region51: #{tpu_custom_call.1} parent=5 // pred_region
        %s1871 = ssub.s32 %s17, 2
        // Predicated region
        $region53: #{tpu_custom_call.1} parent=51 // pred_check
          %p1872 = pneg %p110
        $region54: #{tpu_custom_call.1} parent=51 // pred_check_branch
          %1874 = sbr.rel (%p1872) target = $region56
        $region55: #{tpu_custom_call.1} parent=51 // pred_region
          %s1875 = sand.u32 %s95, 1
          %s1876 = scalar_lea.sflag [#allocation4], %s1875
          %s1877 = sand.u32 %s95, 1
          %s1878 = smul.addr %s1877, 8
          %s1879 = scalar_lea.vmem [#allocation7], %s1878
          %1880 = dma.done %s1876, 128
        $region56: #{tpu_custom_call.1} parent=51 // pred_fallthru
          _
      $region52: #{tpu_custom_call.1} parent=5 // pred_fallthru
        _
    $region6: #{tpu_custom_call.1} parent=1 // loop_footer
      %s21 = sadd.s32 1, %s17
    $region7: #{tpu_custom_call.1} parent=1 // loop_footer_branch
      %16 = sbr.rel target = $region3
    $region8: #{tpu_custom_call.1} parent=1 // loop_exit
      _
    %1881 = vsyncpa [#allocation3], 1
    %s1882 = scalar_lea.sflag [#allocation3], 1
    %1883 = vsyncpa %s1882, 1
    %1884 = vsyncpa [#allocation6], 1
    %s1885 = scalar_lea.sflag [#allocation6], 1
    %1886 = vsyncpa %s1885, 1
    %1887 = vsyncpa [#allocation4], 1
    %s1888 = scalar_lea.sflag [#allocation4], 1
    %1889 = vsyncpa %s1888, 1

</llo_original>
